<compile_context>
chip_gen: v6e
topology: v6e:2x2x1
jax: 0.10.0
libtpu: 0.0.40
codegen_flags: <defaults>
</compile_context>

<pallas_src>
import functools
import math

import jax
import jax.numpy as jnp
import numpy as np
from jax import lax
from jax.experimental import pallas as pl
from jax.experimental.pallas import tpu as pltpu

# Fixed module hyper-parameters (from the PyTorch spec).
C_IN, OC_A, KA = 3, 40, 33
STRIDE, PAD, DIL = 5, 1, 8
OC_B, KB = 3, 14


# -----------------------------------------------------------------------------
# Fused kernel: conv_a matmul + bias + tanh, then ONE ConvTranspose matmul
# against the pre-padded/concatenated weight (= col2im overlap-add) + bias.
# -----------------------------------------------------------------------------
def _fused_model_kernel(p_ref, wa_ref, ba_ref, wb_ref, bb_ref, o_ref, v2_ref,
                        *, n_pos, nb, oc_a):
    # conv_a as one canonical MXU matmul: (n_pos*nb, K) @ (K, OC_a), f32 acc.
    v1 = jnp.dot(p_ref[...], wa_ref[...], preferred_element_type=jnp.float32)
    v2 = jnp.tanh(v1 + ba_ref[...])                      # (n_pos*nb, OC_a) f32

    # Re-lay v2 (rows = pos*nb + n) into (nb, n_pos*OC_a) so the ConvTranspose
    # + col2im overlap-add becomes a single K = n_pos*OC_a matmul.
    for p in range(n_pos):                               # n_pos = 4, unrolled
        v2_ref[:, p * oc_a:(p + 1) * oc_a] = v2[p * nb:(p + 1) * nb, :]

    out = jnp.dot(v2_ref[...].astype(wb_ref.dtype), wb_ref[...],
                  preferred_element_type=jnp.float32)    # (nb, F)
    o_ref[...] = out + bb_ref[...]                       # conv_b bias once


# -----------------------------------------------------------------------------
# One-time weight/bias packing (hoisted out of the per-call hot path).
# -----------------------------------------------------------------------------
def prepack_params(w_a, b_a, w_b, b_b, *, OH, OW, store_dtype=jnp.bfloat16):
    K = C_IN * KA * KA
    OH2, OW2 = OH + KB - 1, OW + KB - 1
    F = OC_B * OH2 * OW2

    # conv_a weight pre-transposed to (K, OC_a): canonical (m,k)x(k,n) matmul.
    wa_t = w_a.reshape(OC_A, K).T.astype(store_dtype)            # (K, 40)
    ba_row = b_a.reshape(1, OC_A).astype(jnp.float32)

    # conv_b weight folded with col2im: pad each 14x14 kernel into its (ih, iw)
    # offset slot of the (OH2, OW2) output frame, concatenate all positions
    # along the contraction axis -> (OH*OW*IC_b, F).  A single matmul against
    # this matrix performs the overlap-add.
    w_cat = jnp.concatenate([
        jnp.pad(w_b, ((0, 0), (0, 0),
                      (ih, OH2 - KB - ih), (iw, OW2 - KB - iw))
                ).reshape(OC_A, F)
        for ih in range(OH) for iw in range(OW)
    ], axis=0).astype(store_dtype)                               # (OH*OW*40, F)
    bb_row = jnp.repeat(b_b.astype(jnp.float32), OH2 * OW2).reshape(1, F)
    return wa_t, ba_row, w_cat, bb_row


# -----------------------------------------------------------------------------
# Per-call forward: im2col glue (XLA) + one fused Pallas kernel.
# -----------------------------------------------------------------------------
def model_tanh_forward(x, wa_t, ba_row, w_cat, bb_row):
    N, C, H, W = x.shape
    K = C * KA * KA
    OH = (H + 2 * PAD - (DIL * (KA - 1) + 1)) // STRIDE + 1
    OW = (W + 2 * PAD - (DIL * (KA - 1) + 1)) // STRIDE + 1
    OH2, OW2 = OH + KB - 1, OW + KB - 1
    n_pos = OH * OW
    F = OC_B * OH2 * OW2

    # ---- im2col for conv_a ---------------------------------------------------
    # TODO(synk): the dilation-8 / stride-5 two-axis gather needs lane-strided
    # in-kernel loads that Mosaic does not reliably support, so it stays as a
    # small (~100 KiB) XLA gather feeding the fused kernel.
    xp = jnp.pad(x, ((0, 0), (0, 0), (PAD, PAD), (PAD, PAD)))
    h_idx = np.arange(OH)[:, None] * STRIDE + np.arange(KA)[None, :] * DIL
    w_idx = np.arange(OW)[:, None] * STRIDE + np.arange(KA)[None, :] * DIL
    patches = xp[:, :, h_idx][:, :, :, :, w_idx]          # (N,C,OH,KA,OW,KA)
    # rows ordered (oh, ow, n): each conv_a position is a contiguous row pair.
    patches = patches.transpose(2, 4, 0, 1, 3, 5).reshape(n_pos * N, K)
    patches = patches.astype(wa_t.dtype)

    kernel = functools.partial(_fused_model_kernel, n_pos=n_pos, nb=N, oc_a=OC_A)
    out_flat = pl.pallas_call(
        kernel,
        out_shape=jax.ShapeDtypeStruct((N, F), jnp.float32),
        grid=(1,),
        in_specs=[
            pl.BlockSpec((n_pos * N, K), lambda i: (0, 0)),     # patches (8, 3267)
            pl.BlockSpec((K, OC_A), lambda i: (0, 0)),          # conv_a weight (3267, 40)
            pl.BlockSpec((1, OC_A), lambda i: (0, 0)),          # conv_a bias
            pl.BlockSpec((n_pos * OC_A, F), lambda i: (0, 0)),  # conv_b weight (160, 675)
            pl.BlockSpec((1, F), lambda i: (0, 0)),             # conv_b bias
        ],
        out_specs=pl.BlockSpec((N, F), lambda i: (0, 0)),
        scratch_shapes=[pltpu.VMEM((N, n_pos * OC_A), jnp.float32)],
        compiler_params=pltpu.CompilerParams(
            dimension_semantics=("arbitrary",)),
    )(patches, wa_t, ba_row, w_cat, bb_row)

    return out_flat.reshape(N, OC_B, OH2, OW2)


# -----------------------------------------------------------------------------
# Pure-JAX reference (for correctness validation)
# -----------------------------------------------------------------------------
def reference_forward(x, w_a, b_a, w_b, b_b):
    v1 = lax.conv_general_dilated(
        x, w_a, window_strides=(STRIDE, STRIDE),
        padding=((PAD, PAD), (PAD, PAD)), rhs_dilation=(DIL, DIL),
        dimension_numbers=("NCHW", "OIHW", "NCHW"),
        precision=lax.Precision.HIGHEST)
    v2 = jnp.tanh(v1 + b_a[None, :, None, None])
    # ConvTranspose2d(stride=1, pad=0) == conv with flipped kernel, full padding
    k_flip = jnp.flip(w_b, axis=(2, 3)).transpose(1, 0, 2, 3)   # (OC_b, IC_b, 14, 14)
    v3 = lax.conv_general_dilated(
        v2, k_flip, window_strides=(1, 1),
        padding=((KB - 1, KB - 1), (KB - 1, KB - 1)),
        dimension_numbers=("NCHW", "OIHW", "NCHW"),
        precision=lax.Precision.HIGHEST)
    return v3 + b_b[None, :, None, None]


# -----------------------------------------------------------------------------
if __name__ == "__main__":
    key = jax.random.PRNGKey(0)
    k1, k2, k3, k4, kx = jax.random.split(key, 5)

    # PyTorch-style uniform init bounds.
    bound_a = 1.0 / math.sqrt(C_IN * KA * KA)
    w_a = jax.random.uniform(k1, (OC_A, C_IN, KA, KA), jnp.float32, -bound_a, bound_a)
    b_a = jax.random.uniform(k2, (OC_A,), jnp.float32, -bound_a, bound_a)

    bound_b = 1.0 / math.sqrt(OC_B * KB * KB)
    w_b = jax.random.uniform(k3, (OC_A, OC_B, KB, KB), jnp.float32, -bound_b, bound_b)
    b_b = jax.random.uniform(k4, (OC_B,), jnp.float32, -bound_b, bound_b)

    # Smallest input that gives a 2x2 conv_a output (effective kernel = 257);
    # the original (2,3,57,50) is smaller than the receptive field and errors
    # in PyTorch too.
    x = jax.random.normal(kx, (2, 3, 260, 260), jnp.float32)

    H, W = x.shape[2], x.shape[3]
    OH = (H + 2 * PAD - (DIL * (KA - 1) + 1)) // STRIDE + 1
    OW = (W + 2 * PAD - (DIL * (KA - 1) + 1)) // STRIDE + 1

    packed = prepack_params(w_a, b_a, w_b, b_b, OH=OH, OW=OW)   # one-time prep
    fwd = jax.jit(model_tanh_forward)

    out = fwd(x, *packed)
    jax.block_until_ready(out)
    assert out.shape == (2, 3, 15, 15), out.shape
    assert out.dtype == jnp.float32

    ref = jax.jit(reference_forward)(x, w_a, b_a, w_b, b_b)
    jax.block_until_ready(ref)
    max_err = float(jnp.max(jnp.abs(out - ref)))
    assert max_err < 1e-2, f"max abs err vs reference: {max_err}"

    print("KERNEL_OK")
</pallas_src>

<mosaic_0001>
module attributes {stable_mosaic.version = 11 : i64} {
  func.func @_fused_model_kernel(%arg0: i32, %arg1: memref<8x3267xbf16, #tpu.memory_space<vmem>>, %arg2: memref<3267x40xbf16, #tpu.memory_space<vmem>>, %arg3: memref<1x40xf32, #tpu.memory_space<vmem>>, %arg4: memref<160x675xbf16, #tpu.memory_space<vmem>>, %arg5: memref<1x675xf32, #tpu.memory_space<vmem>>, %arg6: memref<2x675xf32, #tpu.memory_space<vmem>>, %arg7: memref<2x160xf32, #tpu.memory_space<vmem>>) attributes {dimension_semantics = [#tpu.dimension_semantics<arbitrary>], iteration_bounds = array<i64: 1>, scalar_prefetch = 0 : i64, scratch_operands = 1 : i64, tpu.core_type = #tpu.core_type<tc>, window_params = [{pipeline_mode = #tpu.pipeline_mode<synchronous>, transform_indices = @transform_0, window_bounds = array<i64: 8, 3267>}, {pipeline_mode = #tpu.pipeline_mode<synchronous>, transform_indices = @transform_1, window_bounds = array<i64: 3267, 40>}, {pipeline_mode = #tpu.pipeline_mode<synchronous>, transform_indices = @transform_2, window_bounds = array<i64: 1, 40>}, {pipeline_mode = #tpu.pipeline_mode<synchronous>, transform_indices = @transform_3, window_bounds = array<i64: 160, 675>}, {pipeline_mode = #tpu.pipeline_mode<synchronous>, transform_indices = @transform_4, window_bounds = array<i64: 1, 675>}, {pipeline_mode = #tpu.pipeline_mode<synchronous>, transform_indices = @transform_5, window_bounds = array<i64: 2, 675>}]} {
    %c0 = arith.constant 0 : index
    %c0_0 = arith.constant 0 : index
    %0 = vector.load %arg1[%c0, %c0_0] : memref<8x3267xbf16, #tpu.memory_space<vmem>>, vector<8x3267xbf16>
    %c0_1 = arith.constant 0 : index
    %c0_2 = arith.constant 0 : index
    %1 = vector.load %arg2[%c0_1, %c0_2] : memref<3267x40xbf16, #tpu.memory_space<vmem>>, vector<3267x40xbf16>
    %cst = arith.constant dense<0.000000e+00> : vector<8x40xf32>
    %2 = tpu.matmul %0, %1, %cst {dimension_numbers = #tpu.dot_dimension_numbers<[1], [0], [0], [1], [0, 0, 1, 1], [], []>} : vector<8x3267xbf16>, vector<3267x40xbf16>, vector<8x40xf32> -> vector<8x40xf32>
    %c0_3 = arith.constant 0 : index
    %c0_4 = arith.constant 0 : index
    %3 = vector.load %arg3[%c0_3, %c0_4] : memref<1x40xf32, #tpu.memory_space<vmem>>, vector<1x40xf32>
    %4 = vector.broadcast %3 : vector<1x40xf32> to vector<8x40xf32>
    %5 = arith.addf %2, %4 : vector<8x40xf32>
    %6 = math.tanh %5 : vector<8x40xf32>
    %7 = vector.extract_strided_slice %6 {offsets = [0, 0], sizes = [2, 40], strides = [1, 1]} : vector<8x40xf32> to vector<2x40xf32>
    %c0_5 = arith.constant 0 : index
    %c0_6 = arith.constant 0 : index
    %8 = vector.load %arg7[%c0_5, %c0_6] : memref<2x160xf32, #tpu.memory_space<vmem>>, vector<2x40xf32>
    tpu.vector_store %arg7[%c0_5, %c0_6], %7 {strides = array<i32>} : memref<2x160xf32, #tpu.memory_space<vmem>>, vector<2x40xf32>,
    %9 = vector.extract_strided_slice %6 {offsets = [2, 0], sizes = [2, 40], strides = [1, 1]} : vector<8x40xf32> to vector<2x40xf32>
    %c0_7 = arith.constant 0 : index
    %c40 = arith.constant 40 : index
    %10 = vector.load %arg7[%c0_7, %c40] : memref<2x160xf32, #tpu.memory_space<vmem>>, vector<2x40xf32>
    tpu.vector_store %arg7[%c0_7, %c40], %9 {strides = array<i32>} : memref<2x160xf32, #tpu.memory_space<vmem>>, vector<2x40xf32>,
    %11 = vector.extract_strided_slice %6 {offsets = [4, 0], sizes = [2, 40], strides = [1, 1]} : vector<8x40xf32> to vector<2x40xf32>
    %c0_8 = arith.constant 0 : index
    %c80 = arith.constant 80 : index
    %12 = vector.load %arg7[%c0_8, %c80] : memref<2x160xf32, #tpu.memory_space<vmem>>, vector<2x40xf32>
    tpu.vector_store %arg7[%c0_8, %c80], %11 {strides = array<i32>} : memref<2x160xf32, #tpu.memory_space<vmem>>, vector<2x40xf32>,
    %13 = vector.extract_strided_slice %6 {offsets = [6, 0], sizes = [2, 40], strides = [1, 1]} : vector<8x40xf32> to vector<2x40xf32>
    %c0_9 = arith.constant 0 : index
    %c120 = arith.constant 120 : index
    %14 = vector.load %arg7[%c0_9, %c120] : memref<2x160xf32, #tpu.memory_space<vmem>>, vector<2x40xf32>
    tpu.vector_store %arg7[%c0_9, %c120], %13 {strides = array<i32>} : memref<2x160xf32, #tpu.memory_space<vmem>>, vector<2x40xf32>,
    %c0_10 = arith.constant 0 : index
    %c0_11 = arith.constant 0 : index
    %15 = vector.load %arg7[%c0_10, %c0_11] : memref<2x160xf32, #tpu.memory_space<vmem>>, vector<2x160xf32>
    %16 = arith.truncf %15 : vector<2x160xf32> to vector<2x160xbf16>
    %c0_12 = arith.constant 0 : index
    %c0_13 = arith.constant 0 : index
    %17 = vector.load %arg4[%c0_12, %c0_13] : memref<160x675xbf16, #tpu.memory_space<vmem>>, vector<160x675xbf16>
    %cst_14 = arith.constant dense<0.000000e+00> : vector<2x675xf32>
    %18 = tpu.matmul %16, %17, %cst_14 {dimension_numbers = #tpu.dot_dimension_numbers<[1], [0], [0], [1], [0, 0, 1, 1], [], []>} : vector<2x160xbf16>, vector<160x675xbf16>, vector<2x675xf32> -> vector<2x675xf32>
    %c0_15 = arith.constant 0 : index
    %c0_16 = arith.constant 0 : index
    %19 = vector.load %arg5[%c0_15, %c0_16] : memref<1x675xf32, #tpu.memory_space<vmem>>, vector<1x675xf32>
    %20 = vector.broadcast %19 : vector<1x675xf32> to vector<2x675xf32>
    %21 = arith.addf %18, %20 : vector<2x675xf32>
    %c0_17 = arith.constant 0 : index
    %c0_18 = arith.constant 0 : index
    %22 = vector.load %arg6[%c0_17, %c0_18] : memref<2x675xf32, #tpu.memory_space<vmem>>, vector<2x675xf32>
    tpu.vector_store %arg6[%c0_17, %c0_18], %21 {strides = array<i32>} : memref<2x675xf32, #tpu.memory_space<vmem>>, vector<2x675xf32>,
    return
  }
  func.func @transform_0(%arg0: i32) -> (i32, i32) {
    %c0_i32 = arith.constant 0 : i32
    %c0_i32_0 = arith.constant 0 : i32
    %c0_i32_1 = arith.constant 0 : i32
    return %c0_i32, %c0_i32_0 : i32, i32
  }
  func.func @transform_1(%arg0: i32) -> (i32, i32) {
    %c0_i32 = arith.constant 0 : i32
    %c0_i32_0 = arith.constant 0 : i32
    %c0_i32_1 = arith.constant 0 : i32
    return %c0_i32, %c0_i32_0 : i32, i32
  }
  func.func @transform_2(%arg0: i32) -> (i32, i32) {
    %c0_i32 = arith.constant 0 : i32
    %c0_i32_0 = arith.constant 0 : i32
    %c0_i32_1 = arith.constant 0 : i32
    return %c0_i32, %c0_i32_0 : i32, i32
  }
  func.func @transform_3(%arg0: i32) -> (i32, i32) {
    %c0_i32 = arith.constant 0 : i32
    %c0_i32_0 = arith.constant 0 : i32
    %c0_i32_1 = arith.constant 0 : i32
    return %c0_i32, %c0_i32_0 : i32, i32
  }
  func.func @transform_4(%arg0: i32) -> (i32, i32) {
    %c0_i32 = arith.constant 0 : i32
    %c0_i32_0 = arith.constant 0 : i32
    %c0_i32_1 = arith.constant 0 : i32
    return %c0_i32, %c0_i32_0 : i32, i32
  }
  func.func @transform_5(%arg0: i32) -> (i32, i32) {
    %c0_i32 = arith.constant 0 : i32
    %c0_i32_0 = arith.constant 0 : i32
    %c0_i32_1 = arith.constant 0 : i32
    return %c0_i32, %c0_i32_0 : i32, i32
  }
}

</mosaic_0001>

<llo_original>
// kernel: model_tanh_forward.1
$region0: #{model_tanh_forward.1}
  #allocation0 [shape = 'u32[]', space=smem, size = 0x4, offset = 0x4, fixed_abs, tag = 'smem constant byte address 0x4 - core index']
  #allocation1 [shape = 'u32[144,128]{1,0:T(1,128)}', space=vmem, size = 0x12000, scoped, tag = 'internal scratch']
  #allocation2 [shape = 'f32[2,160]{1,0:T(2,128)}', space=vmem, size = 0x800, scoped, tag = 'scratch operand']
  %s0 = inlined_call_operand.vmem [shape: bf16[8,3267], index: 0, kind: input, shape index: {}]
  %s1 = inlined_call_operand.vmem [shape: bf16[3267,40], index: 1, kind: input, shape index: {}]
  %s2 = inlined_call_operand.vmem [shape: f32[1,40], index: 2, kind: input, shape index: {}]
  %s3 = inlined_call_operand.vmem [shape: bf16[160,675], index: 3, kind: input, shape index: {}]
  %s4 = inlined_call_operand.vmem [shape: f32[1,675], index: 4, kind: input, shape index: {}]
  %s5 = inlined_call_operand.vmem [shape: f32[2,675], index: 5, kind: output, shape index: {}]
  %s6 = sld [smem:[#allocation0]]
  $region30: #{model_tanh_forward.1} parent=0
    _
  %s8 = ssub.s32 1, %s6
  %s9 = scalar_select 0, %s8, %s6
  // Predicated region
  $region2: #{model_tanh_forward.1} parent=0 // pred_check
    _
  $region3: #{model_tanh_forward.1} parent=0 // pred_check_branch
    %11 = sbr.rel (0) target = $region5
  $region4: #{model_tanh_forward.1} parent=0 // pred_region
    _
  $region5: #{model_tanh_forward.1} parent=0 // pred_fallthru
    _
  // Predicated region
  $region6: #{model_tanh_forward.1} parent=0 // pred_check
    _
  $region7: #{model_tanh_forward.1} parent=0 // pred_check_branch
    %13 = sbr.rel (0) target = $region9
  $region8: #{model_tanh_forward.1} parent=0 // pred_region
    _
  $region9: #{model_tanh_forward.1} parent=0 // pred_fallthru
    _
  // Predicated region
  $region10: #{model_tanh_forward.1} parent=0 // pred_check
    _
  $region11: #{model_tanh_forward.1} parent=0 // pred_check_branch
    %15 = sbr.rel (0) target = $region13
  $region12: #{model_tanh_forward.1} parent=0 // pred_region
    _
  $region13: #{model_tanh_forward.1} parent=0 // pred_fallthru
    _
  // Predicated region
  $region14: #{model_tanh_forward.1} parent=0 // pred_check
    _
  $region15: #{model_tanh_forward.1} parent=0 // pred_check_branch
    %17 = sbr.rel (0) target = $region17
  $region16: #{model_tanh_forward.1} parent=0 // pred_region
    _
  $region17: #{model_tanh_forward.1} parent=0 // pred_fallthru
    _
  // Predicated region
  $region18: #{model_tanh_forward.1} parent=0 // pred_check
    _
  $region19: #{model_tanh_forward.1} parent=0 // pred_check_branch
    %19 = sbr.rel (0) target = $region21
  $region20: #{model_tanh_forward.1} parent=0 // pred_region
    _
  $region21: #{model_tanh_forward.1} parent=0 // pred_fallthru
    _
  %v21 = vld [vmem:[%s0] sm:$0xff]
  %v22 = vld [vmem:[%s0 + $0x8] sm:$0xff]
  %v23 = vld [vmem:[%s0 + $0x10] sm:$0xff]
  %v24 = vld [vmem:[%s0 + $0x18] sm:$0xff]
  %v25 = vld [vmem:[%s0 + $0x20] sm:$0xff]
  %v26 = vld [vmem:[%s0 + $0x28] sm:$0xff]
  %v27 = vld [vmem:[%s0 + $0x30] sm:$0xff]
  %v28 = vld [vmem:[%s0 + $0x38] sm:$0xff]
  %v29 = vld [vmem:[%s0 + $0x40] sm:$0xff]
  %v30 = vld [vmem:[%s0 + $0x48] sm:$0xff]
  %v31 = vld [vmem:[%s0 + $0x50] sm:$0xff]
  %v32 = vld [vmem:[%s0 + $0x58] sm:$0xff]
  %v33 = vld [vmem:[%s0 + $0x60] sm:$0xff]
  %v34 = vld [vmem:[%s1] sm:$0xf]
  %v35 = vld [vmem:[%s1 + $0x4] sm:$0xf]
  %v36 = vld [vmem:[%s1 + $0x8] sm:$0xf]
  %v37 = vld [vmem:[%s1 + $0xc] sm:$0xf]
  %v38 = vld [vmem:[%s1 + $0x10] sm:$0xf]
  %v39 = vld [vmem:[%s1 + $0x14] sm:$0xf]
  %v40 = vld [vmem:[%s1 + $0x18] sm:$0xf]
  %v41 = vld [vmem:[%s1 + $0x1c] sm:$0xf]
  %v42 = vld [vmem:[%s1 + $0x20] sm:$0xf]
  %v43 = vld [vmem:[%s1 + $0x24] sm:$0xf]
  %v44 = vld [vmem:[%s1 + $0x28] sm:$0xf]
  %v45 = vld [vmem:[%s1 + $0x2c] sm:$0xf]
  %v46 = vld [vmem:[%s1 + $0x30] sm:$0xf]
  %v47 = vld [vmem:[%s1 + $0x34] sm:$0xf]
  %v48 = vld [vmem:[%s1 + $0x38] sm:$0xf]
  %v49 = vld [vmem:[%s1 + $0x3c] sm:$0xf]
  %v50 = vld [vmem:[%s1 + $0x40] sm:$0xf]
  %v51 = vld [vmem:[%s1 + $0x44] sm:$0xf]
  %v52 = vld [vmem:[%s1 + $0x48] sm:$0xf]
  %v53 = vld [vmem:[%s1 + $0x4c] sm:$0xf]
  %v54 = vld [vmem:[%s1 + $0x50] sm:$0xf]
  %v55 = vld [vmem:[%s1 + $0x54] sm:$0xf]
  %v56 = vld [vmem:[%s1 + $0x58] sm:$0xf]
  %v57 = vld [vmem:[%s1 + $0x5c] sm:$0xf]
  %v58 = vld [vmem:[%s1 + $0x60] sm:$0xf]
  %v59 = vld [vmem:[%s1 + $0x64] sm:$0xf]
  %v60 = vld [vmem:[%s1 + $0x68] sm:$0xf]
  %v61 = vld [vmem:[%s1 + $0x6c] sm:$0xf]
  %v62 = vld [vmem:[%s1 + $0x70] sm:$0xf]
  %v63 = vld [vmem:[%s1 + $0x74] sm:$0xf]
  %v64 = vld [vmem:[%s1 + $0x78] sm:$0xf]
  %v65 = vld [vmem:[%s1 + $0x7c] sm:$0xf]
  %v66 = vld [vmem:[%s1 + $0x80] sm:$0xf]
  %v67 = vld [vmem:[%s1 + $0x84] sm:$0xf]
  %v68 = vld [vmem:[%s1 + $0x88] sm:$0xf]
  %v69 = vld [vmem:[%s1 + $0x8c] sm:$0xf]
  %v70 = vld [vmem:[%s1 + $0x90] sm:$0xf]
  %v71 = vld [vmem:[%s1 + $0x94] sm:$0xf]
  %v72 = vld [vmem:[%s1 + $0x98] sm:$0xf]
  %v73 = vld [vmem:[%s1 + $0x9c] sm:$0xf]
  %v74 = vld [vmem:[%s1 + $0xa0] sm:$0xf]
  %v75 = vld [vmem:[%s1 + $0xa4] sm:$0xf]
  %v76 = vld [vmem:[%s1 + $0xa8] sm:$0xf]
  %v77 = vld [vmem:[%s1 + $0xac] sm:$0xf]
  %v78 = vld [vmem:[%s1 + $0xb0] sm:$0xf]
  %v79 = vld [vmem:[%s1 + $0xb4] sm:$0xf]
  %v80 = vld [vmem:[%s1 + $0xb8] sm:$0xf]
  %v81 = vld [vmem:[%s1 + $0xbc] sm:$0xf]
  %v82 = vld [vmem:[%s1 + $0xc0] sm:$0xf]
  %v83 = vld [vmem:[%s1 + $0xc4] sm:$0xf]
  %v84 = vld [vmem:[%s1 + $0xc8] sm:$0xf]
  %v85 = vld [vmem:[%s1 + $0xcc] sm:$0xf]
  %v86 = vld [vmem:[%s1 + $0xd0] sm:$0xf]
  %v87 = vld [vmem:[%s1 + $0xd4] sm:$0xf]
  %v88 = vld [vmem:[%s1 + $0xd8] sm:$0xf]
  %v89 = vld [vmem:[%s1 + $0xdc] sm:$0xf]
  %v90 = vld [vmem:[%s1 + $0xe0] sm:$0xf]
  %v91 = vld [vmem:[%s1 + $0xe4] sm:$0xf]
  %v92 = vld [vmem:[%s1 + $0xe8] sm:$0xf]
  %v93 = vld [vmem:[%s1 + $0xec] sm:$0xf]
  %v94 = vld [vmem:[%s1 + $0xf0] sm:$0xf]
  %v95 = vld [vmem:[%s1 + $0xf4] sm:$0xf]
  %v96 = vld [vmem:[%s1 + $0xf8] sm:$0xf]
  %v97 = vld [vmem:[%s1 + $0xfc] sm:$0xf]
  %v98 = vld [vmem:[%s1 + $0x100] sm:$0xf]
  %v99 = vld [vmem:[%s1 + $0x104] sm:$0xf]
  %v100 = vld [vmem:[%s1 + $0x108] sm:$0xf]
  %v101 = vld [vmem:[%s1 + $0x10c] sm:$0xf]
  %v102 = vld [vmem:[%s1 + $0x110] sm:$0xf]
  %v103 = vld [vmem:[%s1 + $0x114] sm:$0xf]
  %v104 = vld [vmem:[%s1 + $0x118] sm:$0xf]
  %v105 = vld [vmem:[%s1 + $0x11c] sm:$0xf]
  %v106 = vld [vmem:[%s1 + $0x120] sm:$0xf]
  %v107 = vld [vmem:[%s1 + $0x124] sm:$0xf]
  %v108 = vld [vmem:[%s1 + $0x128] sm:$0xf]
  %v109 = vld [vmem:[%s1 + $0x12c] sm:$0xf]
  %v110 = vld [vmem:[%s1 + $0x130] sm:$0xf]
  %v111 = vld [vmem:[%s1 + $0x134] sm:$0xf]
  %v112 = vld [vmem:[%s1 + $0x138] sm:$0xf]
  %v113 = vld [vmem:[%s1 + $0x13c] sm:$0xf]
  %v114 = vld [vmem:[%s1 + $0x140] sm:$0xf]
  %v115 = vld [vmem:[%s1 + $0x144] sm:$0xf]
  %v116 = vld [vmem:[%s1 + $0x148] sm:$0xf]
  %v117 = vld [vmem:[%s1 + $0x14c] sm:$0xf]
  %v118 = vld [vmem:[%s1 + $0x150] sm:$0xf]
  %v119 = vld [vmem:[%s1 + $0x154] sm:$0xf]
  %v120 = vld [vmem:[%s1 + $0x158] sm:$0xf]
  %v121 = vld [vmem:[%s1 + $0x15c] sm:$0xf]
  %v122 = vld [vmem:[%s1 + $0x160] sm:$0xf]
  %v123 = vld [vmem:[%s1 + $0x164] sm:$0xf]
  %v124 = vld [vmem:[%s1 + $0x168] sm:$0xf]
  %v125 = vld [vmem:[%s1 + $0x16c] sm:$0xf]
  %v126 = vld [vmem:[%s1 + $0x170] sm:$0xf]
  %v127 = vld [vmem:[%s1 + $0x174] sm:$0xf]
  %v128 = vld [vmem:[%s1 + $0x178] sm:$0xf]
  %v129 = vld [vmem:[%s1 + $0x17c] sm:$0xf]
  %v130 = vld [vmem:[%s1 + $0x180] sm:$0xf]
  %v131 = vld [vmem:[%s1 + $0x184] sm:$0xf]
  %v132 = vld [vmem:[%s1 + $0x188] sm:$0xf]
  %v133 = vld [vmem:[%s1 + $0x18c] sm:$0xf]
  %v134 = vld [vmem:[%s1 + $0x190] sm:$0xf]
  %v135 = vld [vmem:[%s1 + $0x194] sm:$0xf]
  %v136 = vld [vmem:[%s1 + $0x198] sm:$0xf]
  %v137 = vld [vmem:[%s1 + $0x19c] sm:$0xf]
  %v138 = vld [vmem:[%s1 + $0x1a0] sm:$0xf]
  %v139 = vld [vmem:[%s1 + $0x1a4] sm:$0xf]
  %v140 = vld [vmem:[%s1 + $0x1a8] sm:$0xf]
  %v141 = vld [vmem:[%s1 + $0x1ac] sm:$0xf]
  %v142 = vld [vmem:[%s1 + $0x1b0] sm:$0xf]
  %v143 = vld [vmem:[%s1 + $0x1b4] sm:$0xf]
  %v144 = vld [vmem:[%s1 + $0x1b8] sm:$0xf]
  %v145 = vld [vmem:[%s1 + $0x1bc] sm:$0xf]
  %v146 = vld [vmem:[%s1 + $0x1c0] sm:$0xf]
  %v147 = vld [vmem:[%s1 + $0x1c4] sm:$0xf]
  %v148 = vld [vmem:[%s1 + $0x1c8] sm:$0xf]
  %v149 = vld [vmem:[%s1 + $0x1cc] sm:$0xf]
  %v150 = vld [vmem:[%s1 + $0x1d0] sm:$0xf]
  %v151 = vld [vmem:[%s1 + $0x1d4] sm:$0xf]
  %v152 = vld [vmem:[%s1 + $0x1d8] sm:$0xf]
  %v153 = vld [vmem:[%s1 + $0x1dc] sm:$0xf]
  %v154 = vld [vmem:[%s1 + $0x1e0] sm:$0xf]
  %v155 = vld [vmem:[%s1 + $0x1e4] sm:$0xf]
  %v156 = vld [vmem:[%s1 + $0x1e8] sm:$0xf]
  %v157 = vld [vmem:[%s1 + $0x1ec] sm:$0xf]
  %v158 = vld [vmem:[%s1 + $0x1f0] sm:$0xf]
  %v159 = vld [vmem:[%s1 + $0x1f4] sm:$0xf]
  %v160 = vld [vmem:[%s1 + $0x1f8] sm:$0xf]
  %v161 = vld [vmem:[%s1 + $0x1fc] sm:$0xf]
  %v162 = vld [vmem:[%s1 + $0x200] sm:$0xf]
  %v163 = vld [vmem:[%s1 + $0x204] sm:$0xf]
  %v164 = vld [vmem:[%s1 + $0x208] sm:$0xf]
  %v165 = vld [vmem:[%s1 + $0x20c] sm:$0xf]
  %v166 = vld [vmem:[%s1 + $0x210] sm:$0xf]
  %v167 = vld [vmem:[%s1 + $0x214] sm:$0xf]
  %v168 = vld [vmem:[%s1 + $0x218] sm:$0xf]
  %v169 = vld [vmem:[%s1 + $0x21c] sm:$0xf]
  %v170 = vld [vmem:[%s1 + $0x220] sm:$0xf]
  %v171 = vld [vmem:[%s1 + $0x224] sm:$0xf]
  %v172 = vld [vmem:[%s1 + $0x228] sm:$0xf]
  %v173 = vld [vmem:[%s1 + $0x22c] sm:$0xf]
  %v174 = vld [vmem:[%s1 + $0x230] sm:$0xf]
  %v175 = vld [vmem:[%s1 + $0x234] sm:$0xf]
  %v176 = vld [vmem:[%s1 + $0x238] sm:$0xf]
  %v177 = vld [vmem:[%s1 + $0x23c] sm:$0xf]
  %v178 = vld [vmem:[%s1 + $0x240] sm:$0xf]
  %v179 = vld [vmem:[%s1 + $0x244] sm:$0xf]
  %v180 = vld [vmem:[%s1 + $0x248] sm:$0xf]
  %v181 = vld [vmem:[%s1 + $0x24c] sm:$0xf]
  %v182 = vld [vmem:[%s1 + $0x250] sm:$0xf]
  %v183 = vld [vmem:[%s1 + $0x254] sm:$0xf]
  %v184 = vld [vmem:[%s1 + $0x258] sm:$0xf]
  %v185 = vld [vmem:[%s1 + $0x25c] sm:$0xf]
  %v186 = vld [vmem:[%s1 + $0x260] sm:$0xf]
  %v187 = vld [vmem:[%s1 + $0x264] sm:$0xf]
  %v188 = vld [vmem:[%s1 + $0x268] sm:$0xf]
  %v189 = vld [vmem:[%s1 + $0x26c] sm:$0xf]
  %v190 = vld [vmem:[%s1 + $0x270] sm:$0xf]
  %v191 = vld [vmem:[%s1 + $0x274] sm:$0xf]
  %v192 = vld [vmem:[%s1 + $0x278] sm:$0xf]
  %v193 = vld [vmem:[%s1 + $0x27c] sm:$0xf]
  %v194 = vld [vmem:[%s1 + $0x280] sm:$0xf]
  %v195 = vld [vmem:[%s1 + $0x284] sm:$0xf]
  %v196 = vld [vmem:[%s1 + $0x288] sm:$0xf]
  %v197 = vld [vmem:[%s1 + $0x28c] sm:$0xf]
  %v198 = vld [vmem:[%s1 + $0x290] sm:$0xf]
  %v199 = vld [vmem:[%s1 + $0x294] sm:$0xf]
  %v200 = vld [vmem:[%s1 + $0x298] sm:$0xf]
  %v201 = vld [vmem:[%s1 + $0x29c] sm:$0xf]
  %v202 = vld [vmem:[%s1 + $0x2a0] sm:$0xf]
  %v203 = vld [vmem:[%s1 + $0x2a4] sm:$0xf]
  %v204 = vld [vmem:[%s1 + $0x2a8] sm:$0xf]
  %v205 = vld [vmem:[%s1 + $0x2ac] sm:$0xf]
  %v206 = vld [vmem:[%s1 + $0x2b0] sm:$0xf]
  %v207 = vld [vmem:[%s1 + $0x2b4] sm:$0xf]
  %v208 = vld [vmem:[%s1 + $0x2b8] sm:$0xf]
  %v209 = vld [vmem:[%s1 + $0x2bc] sm:$0xf]
  %v210 = vld [vmem:[%s1 + $0x2c0] sm:$0xf]
  %v211 = vld [vmem:[%s1 + $0x2c4] sm:$0xf]
  %v212 = vld [vmem:[%s1 + $0x2c8] sm:$0xf]
  %v213 = vld [vmem:[%s1 + $0x2cc] sm:$0xf]
  %v214 = vld [vmem:[%s1 + $0x2d0] sm:$0xf]
  %v215 = vld [vmem:[%s1 + $0x2d4] sm:$0xf]
  %v216 = vld [vmem:[%s1 + $0x2d8] sm:$0xf]
  %v217 = vld [vmem:[%s1 + $0x2dc] sm:$0xf]
  %v218 = vld [vmem:[%s1 + $0x2e0] sm:$0xf]
  %v219 = vld [vmem:[%s1 + $0x2e4] sm:$0xf]
  %v220 = vld [vmem:[%s1 + $0x2e8] sm:$0xf]
  %v221 = vld [vmem:[%s1 + $0x2ec] sm:$0xf]
  %v222 = vld [vmem:[%s1 + $0x2f0] sm:$0xf]
  %v223 = vld [vmem:[%s1 + $0x2f4] sm:$0xf]
  %v224 = vld [vmem:[%s1 + $0x2f8] sm:$0xf]
  %v225 = vld [vmem:[%s1 + $0x2fc] sm:$0xf]
  %v226 = vld [vmem:[%s1 + $0x300] sm:$0xf]
  %v227 = vld [vmem:[%s1 + $0x304] sm:$0xf]
  %v228 = vld [vmem:[%s1 + $0x308] sm:$0xf]
  %v229 = vld [vmem:[%s1 + $0x30c] sm:$0xf]
  %v230 = vld [vmem:[%s1 + $0x310] sm:$0xf]
  %v231 = vld [vmem:[%s1 + $0x314] sm:$0xf]
  %v232 = vld [vmem:[%s1 + $0x318] sm:$0xf]
  %v233 = vld [vmem:[%s1 + $0x31c] sm:$0xf]
  %v234 = vld [vmem:[%s1 + $0x320] sm:$0xf]
  %v235 = vld [vmem:[%s1 + $0x324] sm:$0xf]
  %v236 = vld [vmem:[%s1 + $0x328] sm:$0xf]
  %v237 = vld [vmem:[%s1 + $0x32c] sm:$0xf]
  %v238 = vld [vmem:[%s1 + $0x330] sm:$0xf]
  %v239 = vld [vmem:[%s1 + $0x334] sm:$0xf]
  %v240 = vld [vmem:[%s1 + $0x338] sm:$0xf]
  %v241 = vld [vmem:[%s1 + $0x33c] sm:$0xf]
  %v242 = vld [vmem:[%s1 + $0x340] sm:$0xf]
  %v243 = vld [vmem:[%s1 + $0x344] sm:$0xf]
  %v244 = vld [vmem:[%s1 + $0x348] sm:$0xf]
  %v245 = vld [vmem:[%s1 + $0x34c] sm:$0xf]
  %v246 = vld [vmem:[%s1 + $0x350] sm:$0xf]
  %v247 = vld [vmem:[%s1 + $0x354] sm:$0xf]
  %v248 = vld [vmem:[%s1 + $0x358] sm:$0xf]
  %v249 = vld [vmem:[%s1 + $0x35c] sm:$0xf]
  %v250 = vld [vmem:[%s1 + $0x360] sm:$0xf]
  %v251 = vld [vmem:[%s1 + $0x364] sm:$0xf]
  %v252 = vld [vmem:[%s1 + $0x368] sm:$0xf]
  %v253 = vld [vmem:[%s1 + $0x36c] sm:$0xf]
  %v254 = vld [vmem:[%s1 + $0x370] sm:$0xf]
  %v255 = vld [vmem:[%s1 + $0x374] sm:$0xf]
  %v256 = vld [vmem:[%s1 + $0x378] sm:$0xf]
  %v257 = vld [vmem:[%s1 + $0x37c] sm:$0xf]
  %v258 = vld [vmem:[%s1 + $0x380] sm:$0xf]
  %v259 = vld [vmem:[%s1 + $0x384] sm:$0xf]
  %v260 = vld [vmem:[%s1 + $0x388] sm:$0xf]
  %v261 = vld [vmem:[%s1 + $0x38c] sm:$0xf]
  %v262 = vld [vmem:[%s1 + $0x390] sm:$0xf]
  %v263 = vld [vmem:[%s1 + $0x394] sm:$0xf]
  %v264 = vld [vmem:[%s1 + $0x398] sm:$0xf]
  %v265 = vld [vmem:[%s1 + $0x39c] sm:$0xf]
  %v266 = vld [vmem:[%s1 + $0x3a0] sm:$0xf]
  %v267 = vld [vmem:[%s1 + $0x3a4] sm:$0xf]
  %v268 = vld [vmem:[%s1 + $0x3a8] sm:$0xf]
  %v269 = vld [vmem:[%s1 + $0x3ac] sm:$0xf]
  %v270 = vld [vmem:[%s1 + $0x3b0] sm:$0xf]
  %v271 = vld [vmem:[%s1 + $0x3b4] sm:$0xf]
  %v272 = vld [vmem:[%s1 + $0x3b8] sm:$0xf]
  %v273 = vld [vmem:[%s1 + $0x3bc] sm:$0xf]
  %v274 = vld [vmem:[%s1 + $0x3c0] sm:$0xf]
  %v275 = vld [vmem:[%s1 + $0x3c4] sm:$0xf]
  %v276 = vld [vmem:[%s1 + $0x3c8] sm:$0xf]
  %v277 = vld [vmem:[%s1 + $0x3cc] sm:$0xf]
  %v278 = vld [vmem:[%s1 + $0x3d0] sm:$0xf]
  %v279 = vld [vmem:[%s1 + $0x3d4] sm:$0xf]
  %v280 = vld [vmem:[%s1 + $0x3d8] sm:$0xf]
  %v281 = vld [vmem:[%s1 + $0x3dc] sm:$0xf]
  %v282 = vld [vmem:[%s1 + $0x3e0] sm:$0xf]
  %v283 = vld [vmem:[%s1 + $0x3e4] sm:$0xf]
  %v284 = vld [vmem:[%s1 + $0x3e8] sm:$0xf]
  %v285 = vld [vmem:[%s1 + $0x3ec] sm:$0xf]
  %v286 = vld [vmem:[%s1 + $0x3f0] sm:$0xf]
  %v287 = vld [vmem:[%s1 + $0x3f4] sm:$0xf]
  %v288 = vld [vmem:[%s1 + $0x3f8] sm:$0xf]
  %v289 = vld [vmem:[%s1 + $0x3fc] sm:$0xf]
  %v290 = vld [vmem:[%s1 + $0x400] sm:$0xf]
  %v291 = vld [vmem:[%s1 + $0x404] sm:$0xf]
  %v292 = vld [vmem:[%s1 + $0x408] sm:$0xf]
  %v293 = vld [vmem:[%s1 + $0x40c] sm:$0xf]
  %v294 = vld [vmem:[%s1 + $0x410] sm:$0xf]
  %v295 = vld [vmem:[%s1 + $0x414] sm:$0xf]
  %v296 = vld [vmem:[%s1 + $0x418] sm:$0xf]
  %v297 = vld [vmem:[%s1 + $0x41c] sm:$0xf]
  %v298 = vld [vmem:[%s1 + $0x420] sm:$0xf]
  %v299 = vld [vmem:[%s1 + $0x424] sm:$0xf]
  %v300 = vld [vmem:[%s1 + $0x428] sm:$0xf]
  %v301 = vld [vmem:[%s1 + $0x42c] sm:$0xf]
  %v302 = vld [vmem:[%s1 + $0x430] sm:$0xf]
  %v303 = vld [vmem:[%s1 + $0x434] sm:$0xf]
  %v304 = vld [vmem:[%s1 + $0x438] sm:$0xf]
  %v305 = vld [vmem:[%s1 + $0x43c] sm:$0xf]
  %v306 = vld [vmem:[%s1 + $0x440] sm:$0xf]
  %v307 = vld [vmem:[%s1 + $0x444] sm:$0xf]
  %v308 = vld [vmem:[%s1 + $0x448] sm:$0xf]
  %v309 = vld [vmem:[%s1 + $0x44c] sm:$0xf]
  %v310 = vld [vmem:[%s1 + $0x450] sm:$0xf]
  %v311 = vld [vmem:[%s1 + $0x454] sm:$0xf]
  %v312 = vld [vmem:[%s1 + $0x458] sm:$0xf]
  %v313 = vld [vmem:[%s1 + $0x45c] sm:$0xf]
  %v314 = vld [vmem:[%s1 + $0x460] sm:$0xf]
  %v315 = vld [vmem:[%s1 + $0x464] sm:$0xf]
  %v316 = vld [vmem:[%s1 + $0x468] sm:$0xf]
  %v317 = vld [vmem:[%s1 + $0x46c] sm:$0xf]
  %v318 = vld [vmem:[%s1 + $0x470] sm:$0xf]
  %v319 = vld [vmem:[%s1 + $0x474] sm:$0xf]
  %v320 = vld [vmem:[%s1 + $0x478] sm:$0xf]
  %v321 = vld [vmem:[%s1 + $0x47c] sm:$0xf]
  %v322 = vld [vmem:[%s1 + $0x480] sm:$0xf]
  %v323 = vld [vmem:[%s1 + $0x484] sm:$0xf]
  %v324 = vld [vmem:[%s1 + $0x488] sm:$0xf]
  %v325 = vld [vmem:[%s1 + $0x48c] sm:$0xf]
  %v326 = vld [vmem:[%s1 + $0x490] sm:$0xf]
  %v327 = vld [vmem:[%s1 + $0x494] sm:$0xf]
  %v328 = vld [vmem:[%s1 + $0x498] sm:$0xf]
  %v329 = vld [vmem:[%s1 + $0x49c] sm:$0xf]
  %v330 = vld [vmem:[%s1 + $0x4a0] sm:$0xf]
  %v331 = vld [vmem:[%s1 + $0x4a4] sm:$0xf]
  %v332 = vld [vmem:[%s1 + $0x4a8] sm:$0xf]
  %v333 = vld [vmem:[%s1 + $0x4ac] sm:$0xf]
  %v334 = vld [vmem:[%s1 + $0x4b0] sm:$0xf]
  %v335 = vld [vmem:[%s1 + $0x4b4] sm:$0xf]
  %v336 = vld [vmem:[%s1 + $0x4b8] sm:$0xf]
  %v337 = vld [vmem:[%s1 + $0x4bc] sm:$0xf]
  %v338 = vld [vmem:[%s1 + $0x4c0] sm:$0xf]
  %v339 = vld [vmem:[%s1 + $0x4c4] sm:$0xf]
  %v340 = vld [vmem:[%s1 + $0x4c8] sm:$0xf]
  %v341 = vld [vmem:[%s1 + $0x4cc] sm:$0xf]
  %v342 = vld [vmem:[%s1 + $0x4d0] sm:$0xf]
  %v343 = vld [vmem:[%s1 + $0x4d4] sm:$0xf]
  %v344 = vld [vmem:[%s1 + $0x4d8] sm:$0xf]
  %v345 = vld [vmem:[%s1 + $0x4dc] sm:$0xf]
  %v346 = vld [vmem:[%s1 + $0x4e0] sm:$0xf]
  %v347 = vld [vmem:[%s1 + $0x4e4] sm:$0xf]
  %v348 = vld [vmem:[%s1 + $0x4e8] sm:$0xf]
  %v349 = vld [vmem:[%s1 + $0x4ec] sm:$0xf]
  %v350 = vld [vmem:[%s1 + $0x4f0] sm:$0xf]
  %v351 = vld [vmem:[%s1 + $0x4f4] sm:$0xf]
  %v352 = vld [vmem:[%s1 + $0x4f8] sm:$0xf]
  %v353 = vld [vmem:[%s1 + $0x4fc] sm:$0xf]
  %v354 = vld [vmem:[%s1 + $0x500] sm:$0xf]
  %v355 = vld [vmem:[%s1 + $0x504] sm:$0xf]
  %v356 = vld [vmem:[%s1 + $0x508] sm:$0xf]
  %v357 = vld [vmem:[%s1 + $0x50c] sm:$0xf]
  %v358 = vld [vmem:[%s1 + $0x510] sm:$0xf]
  %v359 = vld [vmem:[%s1 + $0x514] sm:$0xf]
  %v360 = vld [vmem:[%s1 + $0x518] sm:$0xf]
  %v361 = vld [vmem:[%s1 + $0x51c] sm:$0xf]
  %v362 = vld [vmem:[%s1 + $0x520] sm:$0xf]
  %v363 = vld [vmem:[%s1 + $0x524] sm:$0xf]
  %v364 = vld [vmem:[%s1 + $0x528] sm:$0xf]
  %v365 = vld [vmem:[%s1 + $0x52c] sm:$0xf]
  %v366 = vld [vmem:[%s1 + $0x530] sm:$0xf]
  %v367 = vld [vmem:[%s1 + $0x534] sm:$0xf]
  %v368 = vld [vmem:[%s1 + $0x538] sm:$0xf]
  %v369 = vld [vmem:[%s1 + $0x53c] sm:$0xf]
  %v370 = vld [vmem:[%s1 + $0x540] sm:$0xf]
  %v371 = vld [vmem:[%s1 + $0x544] sm:$0xf]
  %v372 = vld [vmem:[%s1 + $0x548] sm:$0xf]
  %v373 = vld [vmem:[%s1 + $0x54c] sm:$0xf]
  %v374 = vld [vmem:[%s1 + $0x550] sm:$0xf]
  %v375 = vld [vmem:[%s1 + $0x554] sm:$0xf]
  %v376 = vld [vmem:[%s1 + $0x558] sm:$0xf]
  %v377 = vld [vmem:[%s1 + $0x55c] sm:$0xf]
  %v378 = vld [vmem:[%s1 + $0x560] sm:$0xf]
  %v379 = vld [vmem:[%s1 + $0x564] sm:$0xf]
  %v380 = vld [vmem:[%s1 + $0x568] sm:$0xf]
  %v381 = vld [vmem:[%s1 + $0x56c] sm:$0xf]
  %v382 = vld [vmem:[%s1 + $0x570] sm:$0xf]
  %v383 = vld [vmem:[%s1 + $0x574] sm:$0xf]
  %v384 = vld [vmem:[%s1 + $0x578] sm:$0xf]
  %v385 = vld [vmem:[%s1 + $0x57c] sm:$0xf]
  %v386 = vld [vmem:[%s1 + $0x580] sm:$0xf]
  %v387 = vld [vmem:[%s1 + $0x584] sm:$0xf]
  %v388 = vld [vmem:[%s1 + $0x588] sm:$0xf]
  %v389 = vld [vmem:[%s1 + $0x58c] sm:$0xf]
  %v390 = vld [vmem:[%s1 + $0x590] sm:$0xf]
  %v391 = vld [vmem:[%s1 + $0x594] sm:$0xf]
  %v392 = vld [vmem:[%s1 + $0x598] sm:$0xf]
  %v393 = vld [vmem:[%s1 + $0x59c] sm:$0xf]
  %v394 = vld [vmem:[%s1 + $0x5a0] sm:$0xf]
  %v395 = vld [vmem:[%s1 + $0x5a4] sm:$0xf]
  %v396 = vld [vmem:[%s1 + $0x5a8] sm:$0xf]
  %v397 = vld [vmem:[%s1 + $0x5ac] sm:$0xf]
  %v398 = vld [vmem:[%s1 + $0x5b0] sm:$0xf]
  %v399 = vld [vmem:[%s1 + $0x5b4] sm:$0xf]
  %v400 = vld [vmem:[%s1 + $0x5b8] sm:$0xf]
  %v401 = vld [vmem:[%s1 + $0x5bc] sm:$0xf]
  %v402 = vld [vmem:[%s1 + $0x5c0] sm:$0xf]
  %v403 = vld [vmem:[%s1 + $0x5c4] sm:$0xf]
  %v404 = vld [vmem:[%s1 + $0x5c8] sm:$0xf]
  %v405 = vld [vmem:[%s1 + $0x5cc] sm:$0xf]
  %v406 = vld [vmem:[%s1 + $0x5d0] sm:$0xf]
  %v407 = vld [vmem:[%s1 + $0x5d4] sm:$0xf]
  %v408 = vld [vmem:[%s1 + $0x5d8] sm:$0xf]
  %v409 = vld [vmem:[%s1 + $0x5dc] sm:$0xf]
  %v410 = vld [vmem:[%s1 + $0x5e0] sm:$0xf]
  %v411 = vld [vmem:[%s1 + $0x5e4] sm:$0xf]
  %v412 = vld [vmem:[%s1 + $0x5e8] sm:$0xf]
  %v413 = vld [vmem:[%s1 + $0x5ec] sm:$0xf]
  %v414 = vld [vmem:[%s1 + $0x5f0] sm:$0xf]
  %v415 = vld [vmem:[%s1 + $0x5f4] sm:$0xf]
  %v416 = vld [vmem:[%s1 + $0x5f8] sm:$0xf]
  %v417 = vld [vmem:[%s1 + $0x5fc] sm:$0xf]
  %v418 = vld [vmem:[%s1 + $0x600] sm:$0xf]
  %v419 = vld [vmem:[%s1 + $0x604] sm:$0xf]
  %v420 = vld [vmem:[%s1 + $0x608] sm:$0xf]
  %v421 = vld [vmem:[%s1 + $0x60c] sm:$0xf]
  %v422 = vld [vmem:[%s1 + $0x610] sm:$0xf]
  %v423 = vld [vmem:[%s1 + $0x614] sm:$0xf]
  %v424 = vld [vmem:[%s1 + $0x618] sm:$0xf]
  %v425 = vld [vmem:[%s1 + $0x61c] sm:$0xf]
  %v426 = vld [vmem:[%s1 + $0x620] sm:$0xf]
  %v427 = vld [vmem:[%s1 + $0x624] sm:$0xf]
  %v428 = vld [vmem:[%s1 + $0x628] sm:$0xf]
  %v429 = vld [vmem:[%s1 + $0x62c] sm:$0xf]
  %v430 = vld [vmem:[%s1 + $0x630] sm:$0xf]
  %v431 = vld [vmem:[%s1 + $0x634] sm:$0xf]
  %v432 = vld [vmem:[%s1 + $0x638] sm:$0xf]
  %v433 = vld [vmem:[%s1 + $0x63c] sm:$0xf]
  %v434 = vld [vmem:[%s1 + $0x640] sm:$0xf]
  %v435 = vld [vmem:[%s1 + $0x644] sm:$0xf]
  %v436 = vld [vmem:[%s1 + $0x648] sm:$0xf]
  %v437 = vld [vmem:[%s1 + $0x64c] sm:$0xf]
  %v438 = vld [vmem:[%s1 + $0x650] sm:$0xf]
  %v439 = vld [vmem:[%s1 + $0x654] sm:$0xf]
  %v440 = vld [vmem:[%s1 + $0x658] sm:$0xf]
  %v441 = vld [vmem:[%s1 + $0x65c] sm:$0xf]
  %v442 = vld [vmem:[%s1 + $0x660] sm:$0x3]
  %v443 = vld [vmem:[%s2] sm:$0x1]
  %v445 = vlaneseq
  %v446 = vshrl.u32 %v445, 7
  %v447 = vsub.s32 0, %v446
  %v448 = vrot.slane %v443, %v447
  %v463 = vunpack.c.l.b16 %v21
  %v464 = vunpack.c.h.b16 %v21
  %v465 = vunpack.c.l.b16 %v22
  %v466 = vunpack.c.h.b16 %v22
  %v467 = vunpack.c.l.b16 %v23
  %v468 = vunpack.c.h.b16 %v23
  %v469 = vunpack.c.l.b16 %v24
  %v470 = vunpack.c.h.b16 %v24
  %v471 = vunpack.c.l.b16 %v25
  %v472 = vunpack.c.h.b16 %v25
  %v473 = vunpack.c.l.b16 %v26
  %v474 = vunpack.c.h.b16 %v26
  %v475 = vunpack.c.l.b16 %v27
  %v476 = vunpack.c.h.b16 %v27
  %v477 = vunpack.c.l.b16 %v28
  %v478 = vunpack.c.h.b16 %v28
  %v479 = vunpack.c.l.b16 %v29
  %v480 = vunpack.c.h.b16 %v29
  %v481 = vunpack.c.l.b16 %v30
  %v482 = vunpack.c.h.b16 %v30
  %v483 = vunpack.c.l.b16 %v31
  %v484 = vunpack.c.h.b16 %v31
  %v485 = vunpack.c.l.b16 %v32
  %v486 = vunpack.c.h.b16 %v32
  %v487 = vunpack.c.l.b16 %v33
  %v488 = vunpack.c.h.b16 %v33
  %v489 = vpack.c.b16 %v463, %v463
  %v490 = vpack.c.b16 %v464, %v464
  %v491 = vpack.c.b16 %v465, %v465
  %v492 = vpack.c.b16 %v466, %v466
  %v493 = vpack.c.b16 %v467, %v467
  %v494 = vpack.c.b16 %v468, %v468
  %v495 = vpack.c.b16 %v469, %v469
  %v496 = vpack.c.b16 %v470, %v470
  %v497 = vpack.c.b16 %v471, %v471
  %v498 = vpack.c.b16 %v472, %v472
  %v499 = vpack.c.b16 %v473, %v473
  %v500 = vpack.c.b16 %v474, %v474
  %v501 = vpack.c.b16 %v475, %v475
  %v502 = vpack.c.b16 %v476, %v476
  %v503 = vpack.c.b16 %v477, %v477
  %v504 = vpack.c.b16 %v478, %v478
  %v505 = vpack.c.b16 %v479, %v479
  %v506 = vpack.c.b16 %v480, %v480
  %v507 = vpack.c.b16 %v481, %v481
  %v508 = vpack.c.b16 %v482, %v482
  %v509 = vpack.c.b16 %v483, %v483
  %v510 = vpack.c.b16 %v484, %v484
  %v511 = vpack.c.b16 %v485, %v485
  %v512 = vpack.c.b16 %v486, %v486
  %v513 = vpack.c.b16 %v487, %v487
  %v514 = vpack.c.b16 %v488, %v488
  %v949 = vunpack.c.l.b16 %v34
  %v950 = vunpack.c.l.b16 %v35
  %v951 = vunpack.c.l.b16 %v36
  %v952 = vunpack.c.l.b16 %v37
  %v953 = vunpack.c.l.b16 %v38
  %v954 = vunpack.c.l.b16 %v39
  %v955 = vunpack.c.l.b16 %v40
  %v956 = vunpack.c.l.b16 %v41
  %v957 = vunpack.c.l.b16 %v42
  %v958 = vunpack.c.l.b16 %v43
  %v959 = vunpack.c.l.b16 %v44
  %v960 = vunpack.c.l.b16 %v45
  %v961 = vunpack.c.l.b16 %v46
  %v962 = vunpack.c.l.b16 %v47
  %v963 = vunpack.c.l.b16 %v48
  %v964 = vunpack.c.l.b16 %v49
  %v965 = vunpack.c.l.b16 %v50
  %v966 = vunpack.c.l.b16 %v51
  %v967 = vunpack.c.l.b16 %v52
  %v968 = vunpack.c.l.b16 %v53
  %v969 = vunpack.c.l.b16 %v54
  %v970 = vunpack.c.l.b16 %v55
  %v971 = vunpack.c.l.b16 %v56
  %v972 = vunpack.c.l.b16 %v57
  %v973 = vunpack.c.l.b16 %v58
  %v974 = vunpack.c.l.b16 %v59
  %v975 = vunpack.c.l.b16 %v60
  %v976 = vunpack.c.l.b16 %v61
  %v977 = vunpack.c.l.b16 %v62
  %v978 = vunpack.c.l.b16 %v63
  %v979 = vunpack.c.l.b16 %v64
  %v980 = vunpack.c.l.b16 %v65
  %v981 = vunpack.c.l.b16 %v66
  %v982 = vunpack.c.l.b16 %v67
  %v983 = vunpack.c.l.b16 %v68
  %v984 = vunpack.c.l.b16 %v69
  %v985 = vunpack.c.l.b16 %v70
  %v986 = vunpack.c.l.b16 %v71
  %v987 = vunpack.c.l.b16 %v72
  %v988 = vunpack.c.l.b16 %v73
  %v989 = vunpack.c.l.b16 %v74
  %v990 = vunpack.c.l.b16 %v75
  %v991 = vunpack.c.l.b16 %v76
  %v992 = vunpack.c.l.b16 %v77
  %v993 = vunpack.c.l.b16 %v78
  %v994 = vunpack.c.l.b16 %v79
  %v995 = vunpack.c.l.b16 %v80
  %v996 = vunpack.c.l.b16 %v81
  %v997 = vunpack.c.l.b16 %v82
  %v998 = vunpack.c.l.b16 %v83
  %v999 = vunpack.c.l.b16 %v84
  %v1000 = vunpack.c.l.b16 %v85
  %v1001 = vunpack.c.l.b16 %v86
  %v1002 = vunpack.c.l.b16 %v87
  %v1003 = vunpack.c.l.b16 %v88
  %v1004 = vunpack.c.l.b16 %v89
  %v1005 = vunpack.c.l.b16 %v90
  %v1006 = vunpack.c.l.b16 %v91
  %v1007 = vunpack.c.l.b16 %v92
  %v1008 = vunpack.c.l.b16 %v93
  %v1009 = vunpack.c.l.b16 %v94
  %v1010 = vunpack.c.l.b16 %v95
  %v1011 = vunpack.c.l.b16 %v96
  %v1012 = vunpack.c.l.b16 %v97
  %v1013 = vunpack.c.l.b16 %v98
  %v1014 = vunpack.c.l.b16 %v99
  %v1015 = vunpack.c.l.b16 %v100
  %v1016 = vunpack.c.l.b16 %v101
  %v1017 = vunpack.c.l.b16 %v102
  %v1018 = vunpack.c.l.b16 %v103
  %v1019 = vunpack.c.l.b16 %v104
  %v1020 = vunpack.c.l.b16 %v105
  %v1021 = vunpack.c.l.b16 %v106
  %v1022 = vunpack.c.l.b16 %v107
  %v1023 = vunpack.c.l.b16 %v108
  %v1024 = vunpack.c.l.b16 %v109
  %v1025 = vunpack.c.l.b16 %v110
  %v1026 = vunpack.c.l.b16 %v111
  %v1027 = vunpack.c.l.b16 %v112
  %v1028 = vunpack.c.l.b16 %v113
  %v1029 = vunpack.c.l.b16 %v114
  %v1030 = vunpack.c.l.b16 %v115
  %v1031 = vunpack.c.l.b16 %v116
  %v1032 = vunpack.c.l.b16 %v117
  %v1033 = vunpack.c.l.b16 %v118
  %v1034 = vunpack.c.l.b16 %v119
  %v1035 = vunpack.c.l.b16 %v120
  %v1036 = vunpack.c.l.b16 %v121
  %v1037 = vunpack.c.l.b16 %v122
  %v1038 = vunpack.c.l.b16 %v123
  %v1039 = vunpack.c.l.b16 %v124
  %v1040 = vunpack.c.l.b16 %v125
  %v1041 = vunpack.c.l.b16 %v126
  %v1042 = vunpack.c.l.b16 %v127
  %v1043 = vunpack.c.l.b16 %v128
  %v1044 = vunpack.c.l.b16 %v129
  %v1045 = vunpack.c.l.b16 %v130
  %v1046 = vunpack.c.l.b16 %v131
  %v1047 = vunpack.c.l.b16 %v132
  %v1048 = vunpack.c.l.b16 %v133
  %v1049 = vunpack.c.l.b16 %v134
  %v1050 = vunpack.c.l.b16 %v135
  %v1051 = vunpack.c.l.b16 %v136
  %v1052 = vunpack.c.l.b16 %v137
  %v1053 = vunpack.c.l.b16 %v138
  %v1054 = vunpack.c.l.b16 %v139
  %v1055 = vunpack.c.l.b16 %v140
  %v1056 = vunpack.c.l.b16 %v141
  %v1057 = vunpack.c.l.b16 %v142
  %v1058 = vunpack.c.l.b16 %v143
  %v1059 = vunpack.c.l.b16 %v144
  %v1060 = vunpack.c.l.b16 %v145
  %v1061 = vunpack.c.l.b16 %v146
  %v1062 = vunpack.c.l.b16 %v147
  %v1063 = vunpack.c.l.b16 %v148
  %v1064 = vunpack.c.l.b16 %v149
  %v1065 = vunpack.c.l.b16 %v150
  %v1066 = vunpack.c.l.b16 %v151
  %v1067 = vunpack.c.l.b16 %v152
  %v1068 = vunpack.c.l.b16 %v153
  %v1069 = vunpack.c.l.b16 %v154
  %v1070 = vunpack.c.l.b16 %v155
  %v1071 = vunpack.c.l.b16 %v156
  %v1072 = vunpack.c.l.b16 %v157
  %v1073 = vunpack.c.l.b16 %v158
  %v1074 = vunpack.c.l.b16 %v159
  %v1075 = vunpack.c.l.b16 %v160
  %v1076 = vunpack.c.l.b16 %v161
  %v1077 = vunpack.c.l.b16 %v162
  %v1078 = vunpack.c.l.b16 %v163
  %v1079 = vunpack.c.l.b16 %v164
  %v1080 = vunpack.c.l.b16 %v165
  %v1081 = vunpack.c.l.b16 %v166
  %v1082 = vunpack.c.l.b16 %v167
  %v1083 = vunpack.c.l.b16 %v168
  %v1084 = vunpack.c.l.b16 %v169
  %v1085 = vunpack.c.l.b16 %v170
  %v1086 = vunpack.c.l.b16 %v171
  %v1087 = vunpack.c.l.b16 %v172
  %v1088 = vunpack.c.l.b16 %v173
  %v1089 = vunpack.c.l.b16 %v174
  %v1090 = vunpack.c.l.b16 %v175
  %v1091 = vunpack.c.l.b16 %v176
  %v1092 = vunpack.c.l.b16 %v177
  %v1093 = vunpack.c.l.b16 %v178
  %v1094 = vunpack.c.l.b16 %v179
  %v1095 = vunpack.c.l.b16 %v180
  %v1096 = vunpack.c.l.b16 %v181
  %v1097 = vunpack.c.l.b16 %v182
  %v1098 = vunpack.c.l.b16 %v183
  %v1099 = vunpack.c.l.b16 %v184
  %v1100 = vunpack.c.l.b16 %v185
  %v1101 = vunpack.c.l.b16 %v186
  %v1102 = vunpack.c.l.b16 %v187
  %v1103 = vunpack.c.l.b16 %v188
  %v1104 = vunpack.c.l.b16 %v189
  %v1105 = vunpack.c.l.b16 %v190
  %v1106 = vunpack.c.l.b16 %v191
  %v1107 = vunpack.c.l.b16 %v192
  %v1108 = vunpack.c.l.b16 %v193
  %v1109 = vunpack.c.l.b16 %v194
  %v1110 = vunpack.c.l.b16 %v195
  %v1111 = vunpack.c.l.b16 %v196
  %v1112 = vunpack.c.l.b16 %v197
  %v1113 = vunpack.c.l.b16 %v198
  %v1114 = vunpack.c.l.b16 %v199
  %v1115 = vunpack.c.l.b16 %v200
  %v1116 = vunpack.c.l.b16 %v201
  %v1117 = vunpack.c.l.b16 %v202
  %v1118 = vunpack.c.l.b16 %v203
  %v1119 = vunpack.c.l.b16 %v204
  %v1120 = vunpack.c.l.b16 %v205
  %v1121 = vunpack.c.l.b16 %v206
  %v1122 = vunpack.c.l.b16 %v207
  %v1123 = vunpack.c.l.b16 %v208
  %v1124 = vunpack.c.l.b16 %v209
  %v1125 = vunpack.c.l.b16 %v210
  %v1126 = vunpack.c.l.b16 %v211
  %v1127 = vunpack.c.l.b16 %v212
  %v1128 = vunpack.c.l.b16 %v213
  %v1129 = vunpack.c.l.b16 %v214
  %v1130 = vunpack.c.l.b16 %v215
  %v1131 = vunpack.c.l.b16 %v216
  %v1132 = vunpack.c.l.b16 %v217
  %v1133 = vunpack.c.l.b16 %v218
  %v1134 = vunpack.c.l.b16 %v219
  %v1135 = vunpack.c.l.b16 %v220
  %v1136 = vunpack.c.l.b16 %v221
  %v1137 = vunpack.c.l.b16 %v222
  %v1138 = vunpack.c.l.b16 %v223
  %v1139 = vunpack.c.l.b16 %v224
  %v1140 = vunpack.c.l.b16 %v225
  %v1141 = vunpack.c.l.b16 %v226
  %v1142 = vunpack.c.l.b16 %v227
  %v1143 = vunpack.c.l.b16 %v228
  %v1144 = vunpack.c.l.b16 %v229
  %v1145 = vunpack.c.l.b16 %v230
  %v1146 = vunpack.c.l.b16 %v231
  %v1147 = vunpack.c.l.b16 %v232
  %v1148 = vunpack.c.l.b16 %v233
  %v1149 = vunpack.c.l.b16 %v234
  %v1150 = vunpack.c.l.b16 %v235
  %v1151 = vunpack.c.l.b16 %v236
  %v1152 = vunpack.c.l.b16 %v237
  %v1153 = vunpack.c.l.b16 %v238
  %v1154 = vunpack.c.l.b16 %v239
  %v1155 = vunpack.c.l.b16 %v240
  %v1156 = vunpack.c.l.b16 %v241
  %v1157 = vunpack.c.l.b16 %v242
  %v1158 = vunpack.c.l.b16 %v243
  %v1159 = vunpack.c.l.b16 %v244
  %v1160 = vunpack.c.l.b16 %v245
  %v1161 = vunpack.c.l.b16 %v246
  %v1162 = vunpack.c.l.b16 %v247
  %v1163 = vunpack.c.l.b16 %v248
  %v1164 = vunpack.c.l.b16 %v249
  %v1165 = vunpack.c.l.b16 %v250
  %v1166 = vunpack.c.l.b16 %v251
  %v1167 = vunpack.c.l.b16 %v252
  %v1168 = vunpack.c.l.b16 %v253
  %v1169 = vunpack.c.l.b16 %v254
  %v1170 = vunpack.c.l.b16 %v255
  %v1171 = vunpack.c.l.b16 %v256
  %v1172 = vunpack.c.l.b16 %v257
  %v1173 = vunpack.c.l.b16 %v258
  %v1174 = vunpack.c.l.b16 %v259
  %v1175 = vunpack.c.l.b16 %v260
  %v1176 = vunpack.c.l.b16 %v261
  %v1177 = vunpack.c.l.b16 %v262
  %v1178 = vunpack.c.l.b16 %v263
  %v1179 = vunpack.c.l.b16 %v264
  %v1180 = vunpack.c.l.b16 %v265
  %v1181 = vunpack.c.l.b16 %v266
  %v1182 = vunpack.c.l.b16 %v267
  %v1183 = vunpack.c.l.b16 %v268
  %v1184 = vunpack.c.l.b16 %v269
  %v1185 = vunpack.c.l.b16 %v270
  %v1186 = vunpack.c.l.b16 %v271
  %v1187 = vunpack.c.l.b16 %v272
  %v1188 = vunpack.c.l.b16 %v273
  %v1189 = vunpack.c.l.b16 %v274
  %v1190 = vunpack.c.l.b16 %v275
  %v1191 = vunpack.c.l.b16 %v276
  %v1192 = vunpack.c.l.b16 %v277
  %v1193 = vunpack.c.l.b16 %v278
  %v1194 = vunpack.c.l.b16 %v279
  %v1195 = vunpack.c.l.b16 %v280
  %v1196 = vunpack.c.l.b16 %v281
  %v1197 = vunpack.c.l.b16 %v282
  %v1198 = vunpack.c.l.b16 %v283
  %v1199 = vunpack.c.l.b16 %v284
  %v1200 = vunpack.c.l.b16 %v285
  %v1201 = vunpack.c.l.b16 %v286
  %v1202 = vunpack.c.l.b16 %v287
  %v1203 = vunpack.c.l.b16 %v288
  %v1204 = vunpack.c.l.b16 %v289
  %v1205 = vunpack.c.l.b16 %v290
  %v1206 = vunpack.c.l.b16 %v291
  %v1207 = vunpack.c.l.b16 %v292
  %v1208 = vunpack.c.l.b16 %v293
  %v1209 = vunpack.c.l.b16 %v294
  %v1210 = vunpack.c.l.b16 %v295
  %v1211 = vunpack.c.l.b16 %v296
  %v1212 = vunpack.c.l.b16 %v297
  %v1213 = vunpack.c.l.b16 %v298
  %v1214 = vunpack.c.l.b16 %v299
  %v1215 = vunpack.c.l.b16 %v300
  %v1216 = vunpack.c.l.b16 %v301
  %v1217 = vunpack.c.l.b16 %v302
  %v1218 = vunpack.c.l.b16 %v303
  %v1219 = vunpack.c.l.b16 %v304
  %v1220 = vunpack.c.l.b16 %v305
  %v1221 = vunpack.c.l.b16 %v306
  %v1222 = vunpack.c.l.b16 %v307
  %v1223 = vunpack.c.l.b16 %v308
  %v1224 = vunpack.c.l.b16 %v309
  %v1225 = vunpack.c.l.b16 %v310
  %v1226 = vunpack.c.l.b16 %v311
  %v1227 = vunpack.c.l.b16 %v312
  %v1228 = vunpack.c.l.b16 %v313
  %v1229 = vunpack.c.l.b16 %v314
  %v1230 = vunpack.c.l.b16 %v315
  %v1231 = vunpack.c.l.b16 %v316
  %v1232 = vunpack.c.l.b16 %v317
  %v1233 = vunpack.c.l.b16 %v318
  %v1234 = vunpack.c.l.b16 %v319
  %v1235 = vunpack.c.l.b16 %v320
  %v1236 = vunpack.c.l.b16 %v321
  %v1237 = vunpack.c.l.b16 %v322
  %v1238 = vunpack.c.l.b16 %v323
  %v1239 = vunpack.c.l.b16 %v324
  %v1240 = vunpack.c.l.b16 %v325
  %v1241 = vunpack.c.l.b16 %v326
  %v1242 = vunpack.c.l.b16 %v327
  %v1243 = vunpack.c.l.b16 %v328
  %v1244 = vunpack.c.l.b16 %v329
  %v1245 = vunpack.c.l.b16 %v330
  %v1246 = vunpack.c.l.b16 %v331
  %v1247 = vunpack.c.l.b16 %v332
  %v1248 = vunpack.c.l.b16 %v333
  %v1249 = vunpack.c.l.b16 %v334
  %v1250 = vunpack.c.l.b16 %v335
  %v1251 = vunpack.c.l.b16 %v336
  %v1252 = vunpack.c.l.b16 %v337
  %v1253 = vunpack.c.l.b16 %v338
  %v1254 = vunpack.c.l.b16 %v339
  %v1255 = vunpack.c.l.b16 %v340
  %v1256 = vunpack.c.l.b16 %v341
  %v1257 = vunpack.c.l.b16 %v342
  %v1258 = vunpack.c.l.b16 %v343
  %v1259 = vunpack.c.l.b16 %v344
  %v1260 = vunpack.c.l.b16 %v345
  %v1261 = vunpack.c.l.b16 %v346
  %v1262 = vunpack.c.l.b16 %v347
  %v1263 = vunpack.c.l.b16 %v348
  %v1264 = vunpack.c.l.b16 %v349
  %v1265 = vunpack.c.l.b16 %v350
  %v1266 = vunpack.c.l.b16 %v351
  %v1267 = vunpack.c.l.b16 %v352
  %v1268 = vunpack.c.l.b16 %v353
  %v1269 = vunpack.c.l.b16 %v354
  %v1270 = vunpack.c.l.b16 %v355
  %v1271 = vunpack.c.l.b16 %v356
  %v1272 = vunpack.c.l.b16 %v357
  %v1273 = vunpack.c.l.b16 %v358
  %v1274 = vunpack.c.l.b16 %v359
  %v1275 = vunpack.c.l.b16 %v360
  %v1276 = vunpack.c.l.b16 %v361
  %v1277 = vunpack.c.l.b16 %v362
  %v1278 = vunpack.c.l.b16 %v363
  %v1279 = vunpack.c.l.b16 %v364
  %v1280 = vunpack.c.l.b16 %v365
  %v1281 = vunpack.c.l.b16 %v366
  %v1282 = vunpack.c.l.b16 %v367
  %v1283 = vunpack.c.l.b16 %v368
  %v1284 = vunpack.c.l.b16 %v369
  %v1285 = vunpack.c.l.b16 %v370
  %v1286 = vunpack.c.l.b16 %v371
  %v1287 = vunpack.c.l.b16 %v372
  %v1288 = vunpack.c.l.b16 %v373
  %v1289 = vunpack.c.l.b16 %v374
  %v1290 = vunpack.c.l.b16 %v375
  %v1291 = vunpack.c.l.b16 %v376
  %v1292 = vunpack.c.l.b16 %v377
  %v1293 = vunpack.c.l.b16 %v378
  %v1294 = vunpack.c.l.b16 %v379
  %v1295 = vunpack.c.l.b16 %v380
  %v1296 = vunpack.c.l.b16 %v381
  %v1297 = vunpack.c.l.b16 %v382
  %v1298 = vunpack.c.l.b16 %v383
  %v1299 = vunpack.c.l.b16 %v384
  %v1300 = vunpack.c.l.b16 %v385
  %v1301 = vunpack.c.l.b16 %v386
  %v1302 = vunpack.c.l.b16 %v387
  %v1303 = vunpack.c.l.b16 %v388
  %v1304 = vunpack.c.l.b16 %v389
  %v1305 = vunpack.c.l.b16 %v390
  %v1306 = vunpack.c.l.b16 %v391
  %v1307 = vunpack.c.l.b16 %v392
  %v1308 = vunpack.c.l.b16 %v393
  %v1309 = vunpack.c.l.b16 %v394
  %v1310 = vunpack.c.l.b16 %v395
  %v1311 = vunpack.c.l.b16 %v396
  %v1312 = vunpack.c.l.b16 %v397
  %v1313 = vunpack.c.l.b16 %v398
  %v1314 = vunpack.c.l.b16 %v399
  %v1315 = vunpack.c.l.b16 %v400
  %v1316 = vunpack.c.l.b16 %v401
  %v1317 = vunpack.c.l.b16 %v402
  %v1318 = vunpack.c.l.b16 %v403
  %v1319 = vunpack.c.l.b16 %v404
  %v1320 = vunpack.c.l.b16 %v405
  %v1321 = vunpack.c.l.b16 %v406
  %v1322 = vunpack.c.l.b16 %v407
  %v1323 = vunpack.c.l.b16 %v408
  %v1324 = vunpack.c.l.b16 %v409
  %v1325 = vunpack.c.l.b16 %v410
  %v1326 = vunpack.c.l.b16 %v411
  %v1327 = vunpack.c.l.b16 %v412
  %v1328 = vunpack.c.l.b16 %v413
  %v1329 = vunpack.c.l.b16 %v414
  %v1330 = vunpack.c.l.b16 %v415
  %v1331 = vunpack.c.l.b16 %v416
  %v1332 = vunpack.c.l.b16 %v417
  %v1333 = vunpack.c.l.b16 %v418
  %v1334 = vunpack.c.l.b16 %v419
  %v1335 = vunpack.c.l.b16 %v420
  %v1336 = vunpack.c.l.b16 %v421
  %v1337 = vunpack.c.l.b16 %v422
  %v1338 = vunpack.c.l.b16 %v423
  %v1339 = vunpack.c.l.b16 %v424
  %v1340 = vunpack.c.l.b16 %v425
  %v1341 = vunpack.c.l.b16 %v426
  %v1342 = vunpack.c.l.b16 %v427
  %v1343 = vunpack.c.l.b16 %v428
  %v1344 = vunpack.c.l.b16 %v429
  %v1345 = vunpack.c.l.b16 %v430
  %v1346 = vunpack.c.l.b16 %v431
  %v1347 = vunpack.c.l.b16 %v432
  %v1348 = vunpack.c.l.b16 %v433
  %v1349 = vunpack.c.l.b16 %v434
  %v1350 = vunpack.c.l.b16 %v435
  %v1351 = vunpack.c.l.b16 %v436
  %v1352 = vunpack.c.l.b16 %v437
  %v1353 = vunpack.c.l.b16 %v438
  %v1354 = vunpack.c.l.b16 %v439
  %v1355 = vunpack.c.l.b16 %v440
  %v1356 = vunpack.c.l.b16 %v441
  %v1357 = vunpack.c.l.b16 %v442
  %v1358 = vpack.c.b16 %v950, %v949
  %v1359 = vpack.c.b16 %v952, %v951
  %v1360 = vpack.c.b16 %v954, %v953
  %v1361 = vpack.c.b16 %v956, %v955
  %v1362 = vpack.c.b16 %v958, %v957
  %v1363 = vpack.c.b16 %v960, %v959
  %v1364 = vpack.c.b16 %v962, %v961
  %v1365 = vpack.c.b16 %v964, %v963
  %v1366 = vpack.c.b16 %v966, %v965
  %v1367 = vpack.c.b16 %v968, %v967
  %v1368 = vpack.c.b16 %v970, %v969
  %v1369 = vpack.c.b16 %v972, %v971
  %v1370 = vpack.c.b16 %v974, %v973
  %v1371 = vpack.c.b16 %v976, %v975
  %v1372 = vpack.c.b16 %v978, %v977
  %v1373 = vpack.c.b16 %v980, %v979
  %v1374 = vpack.c.b16 %v982, %v981
  %v1375 = vpack.c.b16 %v984, %v983
  %v1376 = vpack.c.b16 %v986, %v985
  %v1377 = vpack.c.b16 %v988, %v987
  %v1378 = vpack.c.b16 %v990, %v989
  %v1379 = vpack.c.b16 %v992, %v991
  %v1380 = vpack.c.b16 %v994, %v993
  %v1381 = vpack.c.b16 %v996, %v995
  %v1382 = vpack.c.b16 %v998, %v997
  %v1383 = vpack.c.b16 %v1000, %v999
  %v1384 = vpack.c.b16 %v1002, %v1001
  %v1385 = vpack.c.b16 %v1004, %v1003
  %v1386 = vpack.c.b16 %v1006, %v1005
  %v1387 = vpack.c.b16 %v1008, %v1007
  %v1388 = vpack.c.b16 %v1010, %v1009
  %v1389 = vpack.c.b16 %v1012, %v1011
  %v1390 = vpack.c.b16 %v1014, %v1013
  %v1391 = vpack.c.b16 %v1016, %v1015
  %v1392 = vpack.c.b16 %v1018, %v1017
  %v1393 = vpack.c.b16 %v1020, %v1019
  %v1394 = vpack.c.b16 %v1022, %v1021
  %v1395 = vpack.c.b16 %v1024, %v1023
  %v1396 = vpack.c.b16 %v1026, %v1025
  %v1397 = vpack.c.b16 %v1028, %v1027
  %v1398 = vpack.c.b16 %v1030, %v1029
  %v1399 = vpack.c.b16 %v1032, %v1031
  %v1400 = vpack.c.b16 %v1034, %v1033
  %v1401 = vpack.c.b16 %v1036, %v1035
  %v1402 = vpack.c.b16 %v1038, %v1037
  %v1403 = vpack.c.b16 %v1040, %v1039
  %v1404 = vpack.c.b16 %v1042, %v1041
  %v1405 = vpack.c.b16 %v1044, %v1043
  %v1406 = vpack.c.b16 %v1046, %v1045
  %v1407 = vpack.c.b16 %v1048, %v1047
  %v1408 = vpack.c.b16 %v1050, %v1049
  %v1409 = vpack.c.b16 %v1052, %v1051
  %v1410 = vpack.c.b16 %v1054, %v1053
  %v1411 = vpack.c.b16 %v1056, %v1055
  %v1412 = vpack.c.b16 %v1058, %v1057
  %v1413 = vpack.c.b16 %v1060, %v1059
  %v1414 = vpack.c.b16 %v1062, %v1061
  %v1415 = vpack.c.b16 %v1064, %v1063
  %v1416 = vpack.c.b16 %v1066, %v1065
  %v1417 = vpack.c.b16 %v1068, %v1067
  %v1418 = vpack.c.b16 %v1070, %v1069
  %v1419 = vpack.c.b16 %v1072, %v1071
  %v1420 = vpack.c.b16 %v1074, %v1073
  %v1421 = vpack.c.b16 %v1076, %v1075
  %v1422 = vpack.c.b16 %v1078, %v1077
  %v1423 = vpack.c.b16 %v1080, %v1079
  %v1424 = vpack.c.b16 %v1082, %v1081
  %v1425 = vpack.c.b16 %v1084, %v1083
  %v1426 = vpack.c.b16 %v1086, %v1085
  %v1427 = vpack.c.b16 %v1088, %v1087
  %v1428 = vpack.c.b16 %v1090, %v1089
  %v1429 = vpack.c.b16 %v1092, %v1091
  %v1430 = vpack.c.b16 %v1094, %v1093
  %v1431 = vpack.c.b16 %v1096, %v1095
  %v1432 = vpack.c.b16 %v1098, %v1097
  %v1433 = vpack.c.b16 %v1100, %v1099
  %v1434 = vpack.c.b16 %v1102, %v1101
  %v1435 = vpack.c.b16 %v1104, %v1103
  %v1436 = vpack.c.b16 %v1106, %v1105
  %v1437 = vpack.c.b16 %v1108, %v1107
  %v1438 = vpack.c.b16 %v1110, %v1109
  %v1439 = vpack.c.b16 %v1112, %v1111
  %v1440 = vpack.c.b16 %v1114, %v1113
  %v1441 = vpack.c.b16 %v1116, %v1115
  %v1442 = vpack.c.b16 %v1118, %v1117
  %v1443 = vpack.c.b16 %v1120, %v1119
  %v1444 = vpack.c.b16 %v1122, %v1121
  %v1445 = vpack.c.b16 %v1124, %v1123
  %v1446 = vpack.c.b16 %v1126, %v1125
  %v1447 = vpack.c.b16 %v1128, %v1127
  %v1448 = vpack.c.b16 %v1130, %v1129
  %v1449 = vpack.c.b16 %v1132, %v1131
  %v1450 = vpack.c.b16 %v1134, %v1133
  %v1451 = vpack.c.b16 %v1136, %v1135
  %v1452 = vpack.c.b16 %v1138, %v1137
  %v1453 = vpack.c.b16 %v1140, %v1139
  %v1454 = vpack.c.b16 %v1142, %v1141
  %v1455 = vpack.c.b16 %v1144, %v1143
  %v1456 = vpack.c.b16 %v1146, %v1145
  %v1457 = vpack.c.b16 %v1148, %v1147
  %v1458 = vpack.c.b16 %v1150, %v1149
  %v1459 = vpack.c.b16 %v1152, %v1151
  %v1460 = vpack.c.b16 %v1154, %v1153
  %v1461 = vpack.c.b16 %v1156, %v1155
  %v1462 = vpack.c.b16 %v1158, %v1157
  %v1463 = vpack.c.b16 %v1160, %v1159
  %v1464 = vpack.c.b16 %v1162, %v1161
  %v1465 = vpack.c.b16 %v1164, %v1163
  %v1466 = vpack.c.b16 %v1166, %v1165
  %v1467 = vpack.c.b16 %v1168, %v1167
  %v1468 = vpack.c.b16 %v1170, %v1169
  %v1469 = vpack.c.b16 %v1172, %v1171
  %v1470 = vpack.c.b16 %v1174, %v1173
  %v1471 = vpack.c.b16 %v1176, %v1175
  %v1472 = vpack.c.b16 %v1178, %v1177
  %v1473 = vpack.c.b16 %v1180, %v1179
  %v1474 = vpack.c.b16 %v1182, %v1181
  %v1475 = vpack.c.b16 %v1184, %v1183
  %v1476 = vpack.c.b16 %v1186, %v1185
  %v1477 = vpack.c.b16 %v1188, %v1187
  %v1478 = vpack.c.b16 %v1190, %v1189
  %v1479 = vpack.c.b16 %v1192, %v1191
  %v1480 = vpack.c.b16 %v1194, %v1193
  %v1481 = vpack.c.b16 %v1196, %v1195
  %v1482 = vpack.c.b16 %v1198, %v1197
  %v1483 = vpack.c.b16 %v1200, %v1199
  %v1484 = vpack.c.b16 %v1202, %v1201
  %v1485 = vpack.c.b16 %v1204, %v1203
  %v1486 = vpack.c.b16 %v1206, %v1205
  %v1487 = vpack.c.b16 %v1208, %v1207
  %v1488 = vpack.c.b16 %v1210, %v1209
  %v1489 = vpack.c.b16 %v1212, %v1211
  %v1490 = vpack.c.b16 %v1214, %v1213
  %v1491 = vpack.c.b16 %v1216, %v1215
  %v1492 = vpack.c.b16 %v1218, %v1217
  %v1493 = vpack.c.b16 %v1220, %v1219
  %v1494 = vpack.c.b16 %v1222, %v1221
  %v1495 = vpack.c.b16 %v1224, %v1223
  %v1496 = vpack.c.b16 %v1226, %v1225
  %v1497 = vpack.c.b16 %v1228, %v1227
  %v1498 = vpack.c.b16 %v1230, %v1229
  %v1499 = vpack.c.b16 %v1232, %v1231
  %v1500 = vpack.c.b16 %v1234, %v1233
  %v1501 = vpack.c.b16 %v1236, %v1235
  %v1502 = vpack.c.b16 %v1238, %v1237
  %v1503 = vpack.c.b16 %v1240, %v1239
  %v1504 = vpack.c.b16 %v1242, %v1241
  %v1505 = vpack.c.b16 %v1244, %v1243
  %v1506 = vpack.c.b16 %v1246, %v1245
  %v1507 = vpack.c.b16 %v1248, %v1247
  %v1508 = vpack.c.b16 %v1250, %v1249
  %v1509 = vpack.c.b16 %v1252, %v1251
  %v1510 = vpack.c.b16 %v1254, %v1253
  %v1511 = vpack.c.b16 %v1256, %v1255
  %v1512 = vpack.c.b16 %v1258, %v1257
  %v1513 = vpack.c.b16 %v1260, %v1259
  %v1514 = vpack.c.b16 %v1262, %v1261
  %v1515 = vpack.c.b16 %v1264, %v1263
  %v1516 = vpack.c.b16 %v1266, %v1265
  %v1517 = vpack.c.b16 %v1268, %v1267
  %v1518 = vpack.c.b16 %v1270, %v1269
  %v1519 = vpack.c.b16 %v1272, %v1271
  %v1520 = vpack.c.b16 %v1274, %v1273
  %v1521 = vpack.c.b16 %v1276, %v1275
  %v1522 = vpack.c.b16 %v1278, %v1277
  %v1523 = vpack.c.b16 %v1280, %v1279
  %v1524 = vpack.c.b16 %v1282, %v1281
  %v1525 = vpack.c.b16 %v1284, %v1283
  %v1526 = vpack.c.b16 %v1286, %v1285
  %v1527 = vpack.c.b16 %v1288, %v1287
  %v1528 = vpack.c.b16 %v1290, %v1289
  %v1529 = vpack.c.b16 %v1292, %v1291
  %v1530 = vpack.c.b16 %v1294, %v1293
  %v1531 = vpack.c.b16 %v1296, %v1295
  %v1532 = vpack.c.b16 %v1298, %v1297
  %v1533 = vpack.c.b16 %v1300, %v1299
  %v1534 = vpack.c.b16 %v1302, %v1301
  %v1535 = vpack.c.b16 %v1304, %v1303
  %v1536 = vpack.c.b16 %v1306, %v1305
  %v1537 = vpack.c.b16 %v1308, %v1307
  %v1538 = vpack.c.b16 %v1310, %v1309
  %v1539 = vpack.c.b16 %v1312, %v1311
  %v1540 = vpack.c.b16 %v1314, %v1313
  %v1541 = vpack.c.b16 %v1316, %v1315
  %v1542 = vpack.c.b16 %v1318, %v1317
  %v1543 = vpack.c.b16 %v1320, %v1319
  %v1544 = vpack.c.b16 %v1322, %v1321
  %v1545 = vpack.c.b16 %v1324, %v1323
  %v1546 = vpack.c.b16 %v1326, %v1325
  %v1547 = vpack.c.b16 %v1328, %v1327
  %v1548 = vpack.c.b16 %v1330, %v1329
  %v1549 = vpack.c.b16 %v1332, %v1331
  %v1550 = vpack.c.b16 %v1334, %v1333
  %v1551 = vpack.c.b16 %v1336, %v1335
  %v1552 = vpack.c.b16 %v1338, %v1337
  %v1553 = vpack.c.b16 %v1340, %v1339
  %v1554 = vpack.c.b16 %v1342, %v1341
  %v1555 = vpack.c.b16 %v1344, %v1343
  %v1556 = vpack.c.b16 %v1346, %v1345
  %v1557 = vpack.c.b16 %v1348, %v1347
  %v1558 = vpack.c.b16 %v1350, %v1349
  %v1559 = vpack.c.b16 %v1352, %v1351
  %v1560 = vpack.c.b16 %v1354, %v1353
  %v1561 = vpack.c.b16 %v1356, %v1355
  %v1562 = vpack.c.b16 %v1357, %v1357
  %vm1767 = vcmask 547840
  %v1769 = vsel %vm1767, %v514, 0
  %vm1771 = vcmask 1040384
  %vm1772 = vcmask 1041408
  %v1773 = vsel %vm1771, 4294967295, 65535
  %v1774 = vsel %vm1772, %v1773, 0
  %v1776 = vand.u32 %v1562, %v1774
  %1778 = vmatprep.subr.bf16.mxu0 0
  %1779 = vmatpush1.bf16.msra.mxu0 %v1365
  %1780 = vmatprep.subr.bf16.mxu0 0
  %1781 = vmatpush1.bf16.msra.mxu0 %v1364
  %1782 = vmatprep.subr.bf16.mxu0 0
  %1783 = vmatpush1.bf16.msra.mxu0 %v1363
  %1784 = vmatprep.subr.bf16.mxu0 0
  %1785 = vmatpush1.bf16.msra.mxu0 %v1362
  %1786 = vmatprep.subr.bf16.mxu0 0
  %1787 = vmatpush1.bf16.msra.mxu0 %v1361
  %1788 = vmatprep.subr.bf16.mxu0 0
  %1789 = vmatpush1.bf16.msra.mxu0 %v1360
  %1790 = vmatprep.subr.bf16.mxu0 0
  %1791 = vmatpush1.bf16.msra.mxu0 %v1359
  %1792 = vmatprep.subr.bf16.mxu0 0
  %1793 = vmatpush1.bf16.msra.mxu0 %v1358
  %1794 = vmatprep.subr.bf16.mxu0 0
  %1795 = vmatpush2.bf16.msra.mxu0 %v1373
  %1796 = vmatprep.subr.bf16.mxu0 0
  %1797 = vmatpush2.bf16.msra.mxu0 %v1372
  %1798 = vmatprep.subr.bf16.mxu0 0
  %1799 = vmatpush2.bf16.msra.mxu0 %v1371
  %1800 = vmatprep.subr.bf16.mxu0 0
  %1801 = vmatpush2.bf16.msra.mxu0 %v1370
  %1802 = vmatprep.subr.bf16.mxu0 0
  %1803 = vmatpush2.bf16.msra.mxu0 %v1369
  %1804 = vmatprep.subr.bf16.mxu0 0
  %1805 = vmatpush2.bf16.msra.mxu0 %v1368
  %1806 = vmatprep.subr.bf16.mxu0 0
  %1807 = vmatpush2.bf16.msra.mxu0 %v1367
  %1808 = vmatprep.subr.bf16.mxu0 0
  %1809 = vmatpush2.bf16.msra.mxu0 %v1366
  %1810 = vmatprep.mubr.bf16.mxu0 %v490
  %1811 = vmatmul.mubr.bf16.gmra.mxu0 %v489
  %v1812 = vpop.f32.mrf.mxu0
  %v1813 = vadd.f32 %v448, %v1812
  %v1814 = vpop.f32.mrf.mxu0
  %v1815 = vpop.f32.mrf.mxu0
  %v1816 = vpop.f32.mrf.mxu0
  %1817 = vdwg.mxu0
  %1818 = vmatprep.subr.bf16.mxu0 0
  %1819 = vmatpush1.bf16.msra.mxu0 %v1381
  %1820 = vmatprep.subr.bf16.mxu0 0
  %1821 = vmatpush1.bf16.msra.mxu0 %v1380
  %1822 = vmatprep.subr.bf16.mxu0 0
  %1823 = vmatpush1.bf16.msra.mxu0 %v1379
  %1824 = vmatprep.subr.bf16.mxu0 0
  %1825 = vmatpush1.bf16.msra.mxu0 %v1378
  %1826 = vmatprep.subr.bf16.mxu0 0
  %1827 = vmatpush1.bf16.msra.mxu0 %v1377
  %1828 = vmatprep.subr.bf16.mxu0 0
  %1829 = vmatpush1.bf16.msra.mxu0 %v1376
  %1830 = vmatprep.subr.bf16.mxu0 0
  %1831 = vmatpush1.bf16.msra.mxu0 %v1375
  %1832 = vmatprep.subr.bf16.mxu0 0
  %1833 = vmatpush1.bf16.msra.mxu0 %v1374
  %1834 = vmatprep.subr.bf16.mxu0 0
  %1835 = vmatpush2.bf16.msra.mxu0 %v1389
  %1836 = vmatprep.subr.bf16.mxu0 0
  %1837 = vmatpush2.bf16.msra.mxu0 %v1388
  %1838 = vmatprep.subr.bf16.mxu0 0
  %1839 = vmatpush2.bf16.msra.mxu0 %v1387
  %1840 = vmatprep.subr.bf16.mxu0 0
  %1841 = vmatpush2.bf16.msra.mxu0 %v1386
  %1842 = vmatprep.subr.bf16.mxu0 0
  %1843 = vmatpush2.bf16.msra.mxu0 %v1385
  %1844 = vmatprep.subr.bf16.mxu0 0
  %1845 = vmatpush2.bf16.msra.mxu0 %v1384
  %1846 = vmatprep.subr.bf16.mxu0 0
  %1847 = vmatpush2.bf16.msra.mxu0 %v1383
  %1848 = vmatprep.subr.bf16.mxu0 0
  %1849 = vmatpush2.bf16.msra.mxu0 %v1382
  %1850 = vmatprep.mubr.bf16.mxu0 %v492
  %1851 = vmatmul.mubr.bf16.gmra.mxu0 %v491
  %v1852 = vpop.f32.mrf.mxu0
  %v1853 = vadd.f32 %v1813, %v1852
  %v1854 = vpop.f32.mrf.mxu0
  %v1855 = vpop.f32.mrf.mxu0
  %v1856 = vpop.f32.mrf.mxu0
  %1857 = vdwg.mxu0
  %1858 = vmatprep.subr.bf16.mxu0 0
  %1859 = vmatpush1.bf16.msra.mxu0 %v1397
  %1860 = vmatprep.subr.bf16.mxu0 0
  %1861 = vmatpush1.bf16.msra.mxu0 %v1396
  %1862 = vmatprep.subr.bf16.mxu0 0
  %1863 = vmatpush1.bf16.msra.mxu0 %v1395
  %1864 = vmatprep.subr.bf16.mxu0 0
  %1865 = vmatpush1.bf16.msra.mxu0 %v1394
  %1866 = vmatprep.subr.bf16.mxu0 0
  %1867 = vmatpush1.bf16.msra.mxu0 %v1393
  %1868 = vmatprep.subr.bf16.mxu0 0
  %1869 = vmatpush1.bf16.msra.mxu0 %v1392
  %1870 = vmatprep.subr.bf16.mxu0 0
  %1871 = vmatpush1.bf16.msra.mxu0 %v1391
  %1872 = vmatprep.subr.bf16.mxu0 0
  %1873 = vmatpush1.bf16.msra.mxu0 %v1390
  %1874 = vmatprep.subr.bf16.mxu0 0
  %1875 = vmatpush2.bf16.msra.mxu0 %v1405
  %1876 = vmatprep.subr.bf16.mxu0 0
  %1877 = vmatpush2.bf16.msra.mxu0 %v1404
  %1878 = vmatprep.subr.bf16.mxu0 0
  %1879 = vmatpush2.bf16.msra.mxu0 %v1403
  %1880 = vmatprep.subr.bf16.mxu0 0
  %1881 = vmatpush2.bf16.msra.mxu0 %v1402
  %1882 = vmatprep.subr.bf16.mxu0 0
  %1883 = vmatpush2.bf16.msra.mxu0 %v1401
  %1884 = vmatprep.subr.bf16.mxu0 0
  %1885 = vmatpush2.bf16.msra.mxu0 %v1400
  %1886 = vmatprep.subr.bf16.mxu0 0
  %1887 = vmatpush2.bf16.msra.mxu0 %v1399
  %1888 = vmatprep.subr.bf16.mxu0 0
  %1889 = vmatpush2.bf16.msra.mxu0 %v1398
  %1890 = vmatprep.mubr.bf16.mxu0 %v494
  %1891 = vmatmul.mubr.bf16.gmra.mxu0 %v493
  %v1892 = vpop.f32.mrf.mxu0
  %v1893 = vadd.f32 %v1853, %v1892
  %v1894 = vpop.f32.mrf.mxu0
  %v1895 = vpop.f32.mrf.mxu0
  %v1896 = vpop.f32.mrf.mxu0
  %1897 = vdwg.mxu0
  %1898 = vmatprep.subr.bf16.mxu0 0
  %1899 = vmatpush1.bf16.msra.mxu0 %v1413
  %1900 = vmatprep.subr.bf16.mxu0 0
  %1901 = vmatpush1.bf16.msra.mxu0 %v1412
  %1902 = vmatprep.subr.bf16.mxu0 0
  %1903 = vmatpush1.bf16.msra.mxu0 %v1411
  %1904 = vmatprep.subr.bf16.mxu0 0
  %1905 = vmatpush1.bf16.msra.mxu0 %v1410
  %1906 = vmatprep.subr.bf16.mxu0 0
  %1907 = vmatpush1.bf16.msra.mxu0 %v1409
  %1908 = vmatprep.subr.bf16.mxu0 0
  %1909 = vmatpush1.bf16.msra.mxu0 %v1408
  %1910 = vmatprep.subr.bf16.mxu0 0
  %1911 = vmatpush1.bf16.msra.mxu0 %v1407
  %1912 = vmatprep.subr.bf16.mxu0 0
  %1913 = vmatpush1.bf16.msra.mxu0 %v1406
  %1914 = vmatprep.subr.bf16.mxu0 0
  %1915 = vmatpush2.bf16.msra.mxu0 %v1421
  %1916 = vmatprep.subr.bf16.mxu0 0
  %1917 = vmatpush2.bf16.msra.mxu0 %v1420
  %1918 = vmatprep.subr.bf16.mxu0 0
  %1919 = vmatpush2.bf16.msra.mxu0 %v1419
  %1920 = vmatprep.subr.bf16.mxu0 0
  %1921 = vmatpush2.bf16.msra.mxu0 %v1418
  %1922 = vmatprep.subr.bf16.mxu0 0
  %1923 = vmatpush2.bf16.msra.mxu0 %v1417
  %1924 = vmatprep.subr.bf16.mxu0 0
  %1925 = vmatpush2.bf16.msra.mxu0 %v1416
  %1926 = vmatprep.subr.bf16.mxu0 0
  %1927 = vmatpush2.bf16.msra.mxu0 %v1415
  %1928 = vmatprep.subr.bf16.mxu0 0
  %1929 = vmatpush2.bf16.msra.mxu0 %v1414
  %1930 = vmatprep.mubr.bf16.mxu0 %v496
  %1931 = vmatmul.mubr.bf16.gmra.mxu0 %v495
  %v1932 = vpop.f32.mrf.mxu0
  %v1933 = vadd.f32 %v1893, %v1932
  %v1934 = vpop.f32.mrf.mxu0
  %v1935 = vpop.f32.mrf.mxu0
  %v1936 = vpop.f32.mrf.mxu0
  %1937 = vdwg.mxu0
  %1938 = vmatprep.subr.bf16.mxu0 0
  %1939 = vmatpush1.bf16.msra.mxu0 %v1429
  %1940 = vmatprep.subr.bf16.mxu0 0
  %1941 = vmatpush1.bf16.msra.mxu0 %v1428
  %1942 = vmatprep.subr.bf16.mxu0 0
  %1943 = vmatpush1.bf16.msra.mxu0 %v1427
  %1944 = vmatprep.subr.bf16.mxu0 0
  %1945 = vmatpush1.bf16.msra.mxu0 %v1426
  %1946 = vmatprep.subr.bf16.mxu0 0
  %1947 = vmatpush1.bf16.msra.mxu0 %v1425
  %1948 = vmatprep.subr.bf16.mxu0 0
  %1949 = vmatpush1.bf16.msra.mxu0 %v1424
  %1950 = vmatprep.subr.bf16.mxu0 0
  %1951 = vmatpush1.bf16.msra.mxu0 %v1423
  %1952 = vmatprep.subr.bf16.mxu0 0
  %1953 = vmatpush1.bf16.msra.mxu0 %v1422
  %1954 = vmatprep.subr.bf16.mxu0 0
  %1955 = vmatpush2.bf16.msra.mxu0 %v1437
  %1956 = vmatprep.subr.bf16.mxu0 0
  %1957 = vmatpush2.bf16.msra.mxu0 %v1436
  %1958 = vmatprep.subr.bf16.mxu0 0
  %1959 = vmatpush2.bf16.msra.mxu0 %v1435
  %1960 = vmatprep.subr.bf16.mxu0 0
  %1961 = vmatpush2.bf16.msra.mxu0 %v1434
  %1962 = vmatprep.subr.bf16.mxu0 0
  %1963 = vmatpush2.bf16.msra.mxu0 %v1433
  %1964 = vmatprep.subr.bf16.mxu0 0
  %1965 = vmatpush2.bf16.msra.mxu0 %v1432
  %1966 = vmatprep.subr.bf16.mxu0 0
  %1967 = vmatpush2.bf16.msra.mxu0 %v1431
  %1968 = vmatprep.subr.bf16.mxu0 0
  %1969 = vmatpush2.bf16.msra.mxu0 %v1430
  %1970 = vmatprep.mubr.bf16.mxu0 %v498
  %1971 = vmatmul.mubr.bf16.gmra.mxu0 %v497
  %v1972 = vpop.f32.mrf.mxu0
  %v1973 = vadd.f32 %v1933, %v1972
  %v1974 = vpop.f32.mrf.mxu0
  %v1975 = vpop.f32.mrf.mxu0
  %v1976 = vpop.f32.mrf.mxu0
  %1977 = vdwg.mxu0
  %1978 = vmatprep.subr.bf16.mxu0 0
  %1979 = vmatpush1.bf16.msra.mxu0 %v1445
  %1980 = vmatprep.subr.bf16.mxu0 0
  %1981 = vmatpush1.bf16.msra.mxu0 %v1444
  %1982 = vmatprep.subr.bf16.mxu0 0
  %1983 = vmatpush1.bf16.msra.mxu0 %v1443
  %1984 = vmatprep.subr.bf16.mxu0 0
  %1985 = vmatpush1.bf16.msra.mxu0 %v1442
  %1986 = vmatprep.subr.bf16.mxu0 0
  %1987 = vmatpush1.bf16.msra.mxu0 %v1441
  %1988 = vmatprep.subr.bf16.mxu0 0
  %1989 = vmatpush1.bf16.msra.mxu0 %v1440
  %1990 = vmatprep.subr.bf16.mxu0 0
  %1991 = vmatpush1.bf16.msra.mxu0 %v1439
  %1992 = vmatprep.subr.bf16.mxu0 0
  %1993 = vmatpush1.bf16.msra.mxu0 %v1438
  %1994 = vmatprep.subr.bf16.mxu0 0
  %1995 = vmatpush2.bf16.msra.mxu0 %v1453
  %1996 = vmatprep.subr.bf16.mxu0 0
  %1997 = vmatpush2.bf16.msra.mxu0 %v1452
  %1998 = vmatprep.subr.bf16.mxu0 0
  %1999 = vmatpush2.bf16.msra.mxu0 %v1451
  %2000 = vmatprep.subr.bf16.mxu0 0
  %2001 = vmatpush2.bf16.msra.mxu0 %v1450
  %2002 = vmatprep.subr.bf16.mxu0 0
  %2003 = vmatpush2.bf16.msra.mxu0 %v1449
  %2004 = vmatprep.subr.bf16.mxu0 0
  %2005 = vmatpush2.bf16.msra.mxu0 %v1448
  %2006 = vmatprep.subr.bf16.mxu0 0
  %2007 = vmatpush2.bf16.msra.mxu0 %v1447
  %2008 = vmatprep.subr.bf16.mxu0 0
  %2009 = vmatpush2.bf16.msra.mxu0 %v1446
  %2010 = vmatprep.mubr.bf16.mxu0 %v500
  %2011 = vmatmul.mubr.bf16.gmra.mxu0 %v499
  %v2012 = vpop.f32.mrf.mxu0
  %v2013 = vadd.f32 %v1973, %v2012
  %v2014 = vpop.f32.mrf.mxu0
  %v2015 = vpop.f32.mrf.mxu0
  %v2016 = vpop.f32.mrf.mxu0
  %2017 = vdwg.mxu0
  %2018 = vmatprep.subr.bf16.mxu0 0
  %2019 = vmatpush1.bf16.msra.mxu0 %v1461
  %2020 = vmatprep.subr.bf16.mxu0 0
  %2021 = vmatpush1.bf16.msra.mxu0 %v1460
  %2022 = vmatprep.subr.bf16.mxu0 0
  %2023 = vmatpush1.bf16.msra.mxu0 %v1459
  %2024 = vmatprep.subr.bf16.mxu0 0
  %2025 = vmatpush1.bf16.msra.mxu0 %v1458
  %2026 = vmatprep.subr.bf16.mxu0 0
  %2027 = vmatpush1.bf16.msra.mxu0 %v1457
  %2028 = vmatprep.subr.bf16.mxu0 0
  %2029 = vmatpush1.bf16.msra.mxu0 %v1456
  %2030 = vmatprep.subr.bf16.mxu0 0
  %2031 = vmatpush1.bf16.msra.mxu0 %v1455
  %2032 = vmatprep.subr.bf16.mxu0 0
  %2033 = vmatpush1.bf16.msra.mxu0 %v1454
  %2034 = vmatprep.subr.bf16.mxu0 0
  %2035 = vmatpush2.bf16.msra.mxu0 %v1469
  %2036 = vmatprep.subr.bf16.mxu0 0
  %2037 = vmatpush2.bf16.msra.mxu0 %v1468
  %2038 = vmatprep.subr.bf16.mxu0 0
  %2039 = vmatpush2.bf16.msra.mxu0 %v1467
  %2040 = vmatprep.subr.bf16.mxu0 0
  %2041 = vmatpush2.bf16.msra.mxu0 %v1466
  %2042 = vmatprep.subr.bf16.mxu0 0
  %2043 = vmatpush2.bf16.msra.mxu0 %v1465
  %2044 = vmatprep.subr.bf16.mxu0 0
  %2045 = vmatpush2.bf16.msra.mxu0 %v1464
  %2046 = vmatprep.subr.bf16.mxu0 0
  %2047 = vmatpush2.bf16.msra.mxu0 %v1463
  %2048 = vmatprep.subr.bf16.mxu0 0
  %2049 = vmatpush2.bf16.msra.mxu0 %v1462
  %2050 = vmatprep.mubr.bf16.mxu0 %v502
  %2051 = vmatmul.mubr.bf16.gmra.mxu0 %v501
  %v2052 = vpop.f32.mrf.mxu0
  %v2053 = vadd.f32 %v2013, %v2052
  %v2054 = vpop.f32.mrf.mxu0
  %v2055 = vpop.f32.mrf.mxu0
  %v2056 = vpop.f32.mrf.mxu0
  %2057 = vdwg.mxu0
  %2058 = vmatprep.subr.bf16.mxu0 0
  %2059 = vmatpush1.bf16.msra.mxu0 %v1477
  %2060 = vmatprep.subr.bf16.mxu0 0
  %2061 = vmatpush1.bf16.msra.mxu0 %v1476
  %2062 = vmatprep.subr.bf16.mxu0 0
  %2063 = vmatpush1.bf16.msra.mxu0 %v1475
  %2064 = vmatprep.subr.bf16.mxu0 0
  %2065 = vmatpush1.bf16.msra.mxu0 %v1474
  %2066 = vmatprep.subr.bf16.mxu0 0
  %2067 = vmatpush1.bf16.msra.mxu0 %v1473
  %2068 = vmatprep.subr.bf16.mxu0 0
  %2069 = vmatpush1.bf16.msra.mxu0 %v1472
  %2070 = vmatprep.subr.bf16.mxu0 0
  %2071 = vmatpush1.bf16.msra.mxu0 %v1471
  %2072 = vmatprep.subr.bf16.mxu0 0
  %2073 = vmatpush1.bf16.msra.mxu0 %v1470
  %2074 = vmatprep.subr.bf16.mxu0 0
  %2075 = vmatpush2.bf16.msra.mxu0 %v1485
  %2076 = vmatprep.subr.bf16.mxu0 0
  %2077 = vmatpush2.bf16.msra.mxu0 %v1484
  %2078 = vmatprep.subr.bf16.mxu0 0
  %2079 = vmatpush2.bf16.msra.mxu0 %v1483
  %2080 = vmatprep.subr.bf16.mxu0 0
  %2081 = vmatpush2.bf16.msra.mxu0 %v1482
  %2082 = vmatprep.subr.bf16.mxu0 0
  %2083 = vmatpush2.bf16.msra.mxu0 %v1481
  %2084 = vmatprep.subr.bf16.mxu0 0
  %2085 = vmatpush2.bf16.msra.mxu0 %v1480
  %2086 = vmatprep.subr.bf16.mxu0 0
  %2087 = vmatpush2.bf16.msra.mxu0 %v1479
  %2088 = vmatprep.subr.bf16.mxu0 0
  %2089 = vmatpush2.bf16.msra.mxu0 %v1478
  %2090 = vmatprep.mubr.bf16.mxu0 %v504
  %2091 = vmatmul.mubr.bf16.gmra.mxu0 %v503
  %v2092 = vpop.f32.mrf.mxu0
  %v2093 = vadd.f32 %v2053, %v2092
  %v2094 = vpop.f32.mrf.mxu0
  %v2095 = vpop.f32.mrf.mxu0
  %v2096 = vpop.f32.mrf.mxu0
  %2097 = vdwg.mxu0
  %2098 = vmatprep.subr.bf16.mxu0 0
  %2099 = vmatpush1.bf16.msra.mxu0 %v1493
  %2100 = vmatprep.subr.bf16.mxu0 0
  %2101 = vmatpush1.bf16.msra.mxu0 %v1492
  %2102 = vmatprep.subr.bf16.mxu0 0
  %2103 = vmatpush1.bf16.msra.mxu0 %v1491
  %2104 = vmatprep.subr.bf16.mxu0 0
  %2105 = vmatpush1.bf16.msra.mxu0 %v1490
  %2106 = vmatprep.subr.bf16.mxu0 0
  %2107 = vmatpush1.bf16.msra.mxu0 %v1489
  %2108 = vmatprep.subr.bf16.mxu0 0
  %2109 = vmatpush1.bf16.msra.mxu0 %v1488
  %2110 = vmatprep.subr.bf16.mxu0 0
  %2111 = vmatpush1.bf16.msra.mxu0 %v1487
  %2112 = vmatprep.subr.bf16.mxu0 0
  %2113 = vmatpush1.bf16.msra.mxu0 %v1486
  %2114 = vmatprep.subr.bf16.mxu0 0
  %2115 = vmatpush2.bf16.msra.mxu0 %v1501
  %2116 = vmatprep.subr.bf16.mxu0 0
  %2117 = vmatpush2.bf16.msra.mxu0 %v1500
  %2118 = vmatprep.subr.bf16.mxu0 0
  %2119 = vmatpush2.bf16.msra.mxu0 %v1499
  %2120 = vmatprep.subr.bf16.mxu0 0
  %2121 = vmatpush2.bf16.msra.mxu0 %v1498
  %2122 = vmatprep.subr.bf16.mxu0 0
  %2123 = vmatpush2.bf16.msra.mxu0 %v1497
  %2124 = vmatprep.subr.bf16.mxu0 0
  %2125 = vmatpush2.bf16.msra.mxu0 %v1496
  %2126 = vmatprep.subr.bf16.mxu0 0
  %2127 = vmatpush2.bf16.msra.mxu0 %v1495
  %2128 = vmatprep.subr.bf16.mxu0 0
  %2129 = vmatpush2.bf16.msra.mxu0 %v1494
  %2130 = vmatprep.mubr.bf16.mxu0 %v506
  %2131 = vmatmul.mubr.bf16.gmra.mxu0 %v505
  %v2132 = vpop.f32.mrf.mxu0
  %v2133 = vadd.f32 %v2093, %v2132
  %v2134 = vpop.f32.mrf.mxu0
  %v2135 = vpop.f32.mrf.mxu0
  %v2136 = vpop.f32.mrf.mxu0
  %2137 = vdwg.mxu0
  %2138 = vmatprep.subr.bf16.mxu0 0
  %2139 = vmatpush1.bf16.msra.mxu0 %v1509
  %2140 = vmatprep.subr.bf16.mxu0 0
  %2141 = vmatpush1.bf16.msra.mxu0 %v1508
  %2142 = vmatprep.subr.bf16.mxu0 0
  %2143 = vmatpush1.bf16.msra.mxu0 %v1507
  %2144 = vmatprep.subr.bf16.mxu0 0
  %2145 = vmatpush1.bf16.msra.mxu0 %v1506
  %2146 = vmatprep.subr.bf16.mxu0 0
  %2147 = vmatpush1.bf16.msra.mxu0 %v1505
  %2148 = vmatprep.subr.bf16.mxu0 0
  %2149 = vmatpush1.bf16.msra.mxu0 %v1504
  %2150 = vmatprep.subr.bf16.mxu0 0
  %2151 = vmatpush1.bf16.msra.mxu0 %v1503
  %2152 = vmatprep.subr.bf16.mxu0 0
  %2153 = vmatpush1.bf16.msra.mxu0 %v1502
  %2154 = vmatprep.subr.bf16.mxu0 0
  %2155 = vmatpush2.bf16.msra.mxu0 %v1517
  %2156 = vmatprep.subr.bf16.mxu0 0
  %2157 = vmatpush2.bf16.msra.mxu0 %v1516
  %2158 = vmatprep.subr.bf16.mxu0 0
  %2159 = vmatpush2.bf16.msra.mxu0 %v1515
  %2160 = vmatprep.subr.bf16.mxu0 0
  %2161 = vmatpush2.bf16.msra.mxu0 %v1514
  %2162 = vmatprep.subr.bf16.mxu0 0
  %2163 = vmatpush2.bf16.msra.mxu0 %v1513
  %2164 = vmatprep.subr.bf16.mxu0 0
  %2165 = vmatpush2.bf16.msra.mxu0 %v1512
  %2166 = vmatprep.subr.bf16.mxu0 0
  %2167 = vmatpush2.bf16.msra.mxu0 %v1511
  %2168 = vmatprep.subr.bf16.mxu0 0
  %2169 = vmatpush2.bf16.msra.mxu0 %v1510
  %2170 = vmatprep.mubr.bf16.mxu0 %v508
  %2171 = vmatmul.mubr.bf16.gmra.mxu0 %v507
  %v2172 = vpop.f32.mrf.mxu0
  %v2173 = vadd.f32 %v2133, %v2172
  %v2174 = vpop.f32.mrf.mxu0
  %v2175 = vpop.f32.mrf.mxu0
  %v2176 = vpop.f32.mrf.mxu0
  %2177 = vdwg.mxu0
  %2178 = vmatprep.subr.bf16.mxu0 0
  %2179 = vmatpush1.bf16.msra.mxu0 %v1525
  %2180 = vmatprep.subr.bf16.mxu0 0
  %2181 = vmatpush1.bf16.msra.mxu0 %v1524
  %2182 = vmatprep.subr.bf16.mxu0 0
  %2183 = vmatpush1.bf16.msra.mxu0 %v1523
  %2184 = vmatprep.subr.bf16.mxu0 0
  %2185 = vmatpush1.bf16.msra.mxu0 %v1522
  %2186 = vmatprep.subr.bf16.mxu0 0
  %2187 = vmatpush1.bf16.msra.mxu0 %v1521
  %2188 = vmatprep.subr.bf16.mxu0 0
  %2189 = vmatpush1.bf16.msra.mxu0 %v1520
  %2190 = vmatprep.subr.bf16.mxu0 0
  %2191 = vmatpush1.bf16.msra.mxu0 %v1519
  %2192 = vmatprep.subr.bf16.mxu0 0
  %2193 = vmatpush1.bf16.msra.mxu0 %v1518
  %2194 = vmatprep.subr.bf16.mxu0 0
  %2195 = vmatpush2.bf16.msra.mxu0 %v1533
  %2196 = vmatprep.subr.bf16.mxu0 0
  %2197 = vmatpush2.bf16.msra.mxu0 %v1532
  %2198 = vmatprep.subr.bf16.mxu0 0
  %2199 = vmatpush2.bf16.msra.mxu0 %v1531
  %2200 = vmatprep.subr.bf16.mxu0 0
  %2201 = vmatpush2.bf16.msra.mxu0 %v1530
  %2202 = vmatprep.subr.bf16.mxu0 0
  %2203 = vmatpush2.bf16.msra.mxu0 %v1529
  %2204 = vmatprep.subr.bf16.mxu0 0
  %2205 = vmatpush2.bf16.msra.mxu0 %v1528
  %2206 = vmatprep.subr.bf16.mxu0 0
  %2207 = vmatpush2.bf16.msra.mxu0 %v1527
  %2208 = vmatprep.subr.bf16.mxu0 0
  %2209 = vmatpush2.bf16.msra.mxu0 %v1526
  %2210 = vmatprep.mubr.bf16.mxu0 %v510
  %2211 = vmatmul.mubr.bf16.gmra.mxu0 %v509
  %v2212 = vpop.f32.mrf.mxu0
  %v2213 = vadd.f32 %v2173, %v2212
  %v2214 = vpop.f32.mrf.mxu0
  %v2215 = vpop.f32.mrf.mxu0
  %v2216 = vpop.f32.mrf.mxu0
  %2217 = vdwg.mxu0
  %2218 = vmatprep.subr.bf16.mxu0 0
  %2219 = vmatpush1.bf16.msra.mxu0 %v1541
  %2220 = vmatprep.subr.bf16.mxu0 0
  %2221 = vmatpush1.bf16.msra.mxu0 %v1540
  %2222 = vmatprep.subr.bf16.mxu0 0
  %2223 = vmatpush1.bf16.msra.mxu0 %v1539
  %2224 = vmatprep.subr.bf16.mxu0 0
  %2225 = vmatpush1.bf16.msra.mxu0 %v1538
  %2226 = vmatprep.subr.bf16.mxu0 0
  %2227 = vmatpush1.bf16.msra.mxu0 %v1537
  %2228 = vmatprep.subr.bf16.mxu0 0
  %2229 = vmatpush1.bf16.msra.mxu0 %v1536
  %2230 = vmatprep.subr.bf16.mxu0 0
  %2231 = vmatpush1.bf16.msra.mxu0 %v1535
  %2232 = vmatprep.subr.bf16.mxu0 0
  %2233 = vmatpush1.bf16.msra.mxu0 %v1534
  %2234 = vmatprep.subr.bf16.mxu0 0
  %2235 = vmatpush2.bf16.msra.mxu0 %v1549
  %2236 = vmatprep.subr.bf16.mxu0 0
  %2237 = vmatpush2.bf16.msra.mxu0 %v1548
  %2238 = vmatprep.subr.bf16.mxu0 0
  %2239 = vmatpush2.bf16.msra.mxu0 %v1547
  %2240 = vmatprep.subr.bf16.mxu0 0
  %2241 = vmatpush2.bf16.msra.mxu0 %v1546
  %2242 = vmatprep.subr.bf16.mxu0 0
  %2243 = vmatpush2.bf16.msra.mxu0 %v1545
  %2244 = vmatprep.subr.bf16.mxu0 0
  %2245 = vmatpush2.bf16.msra.mxu0 %v1544
  %2246 = vmatprep.subr.bf16.mxu0 0
  %2247 = vmatpush2.bf16.msra.mxu0 %v1543
  %2248 = vmatprep.subr.bf16.mxu0 0
  %2249 = vmatpush2.bf16.msra.mxu0 %v1542
  %2250 = vmatprep.mubr.bf16.mxu0 %v512
  %2251 = vmatmul.mubr.bf16.gmra.mxu0 %v511
  %v2252 = vpop.f32.mrf.mxu0
  %v2253 = vadd.f32 %v2213, %v2252
  %v2254 = vpop.f32.mrf.mxu0
  %v2255 = vpop.f32.mrf.mxu0
  %v2256 = vpop.f32.mrf.mxu0
  %2257 = vdwg.mxu0
  %2258 = vmatprep.subr.bf16.mxu0 0
  %2259 = vmatpush1.bf16.msra.mxu0 %v1557
  %2260 = vmatprep.subr.bf16.mxu0 0
  %2261 = vmatpush1.bf16.msra.mxu0 %v1556
  %2262 = vmatprep.subr.bf16.mxu0 0
  %2263 = vmatpush1.bf16.msra.mxu0 %v1555
  %2264 = vmatprep.subr.bf16.mxu0 0
  %2265 = vmatpush1.bf16.msra.mxu0 %v1554
  %2266 = vmatprep.subr.bf16.mxu0 0
  %2267 = vmatpush1.bf16.msra.mxu0 %v1553
  %2268 = vmatprep.subr.bf16.mxu0 0
  %2269 = vmatpush1.bf16.msra.mxu0 %v1552
  %2270 = vmatprep.subr.bf16.mxu0 0
  %2271 = vmatpush1.bf16.msra.mxu0 %v1551
  %2272 = vmatprep.subr.bf16.mxu0 0
  %2273 = vmatpush1.bf16.msra.mxu0 %v1550
  %2274 = vmatprep.subr.bf16.mxu0 0
  %2275 = vmatpush2.bf16.msra.mxu0 0
  %2276 = vmatprep.subr.bf16.mxu0 0
  %2277 = vmatpush2.bf16.msra.mxu0 0
  %2278 = vmatprep.subr.bf16.mxu0 0
  %2279 = vmatpush2.bf16.msra.mxu0 0
  %2280 = vmatprep.subr.bf16.mxu0 0
  %2281 = vmatpush2.bf16.msra.mxu0 %v1776
  %2282 = vmatprep.subr.bf16.mxu0 0
  %2283 = vmatpush2.bf16.msra.mxu0 %v1561
  %2284 = vmatprep.subr.bf16.mxu0 0
  %2285 = vmatpush2.bf16.msra.mxu0 %v1560
  %2286 = vmatprep.subr.bf16.mxu0 0
  %2287 = vmatpush2.bf16.msra.mxu0 %v1559
  %2288 = vmatprep.subr.bf16.mxu0 0
  %2289 = vmatpush2.bf16.msra.mxu0 %v1558
  %2290 = vmatprep.mubr.bf16.mxu0 %v1769
  %2291 = vmatmul.mubr.bf16.gmra.mxu0 %v513
  %v2292 = vpop.f32.mrf.mxu0
  %v2293 = vadd.f32 %v2253, %v2292
  %v2294 = vpop.f32.mrf.mxu0
  %v2295 = vpop.f32.mrf.mxu0
  %v2296 = vpop.f32.mrf.mxu0
  %2297 = vdwg.mxu0
  %v2298 = vtanh.pop %v2293
  %vm2299 = vcmask 320512
  %2300 = vst.msk [vmem:[#allocation2] sm:$0x3] %vm2299, %v2298
  %v2303 = vunpack.c.l.s4 1983009808
  %v2304 = vunpack.c.0.s8 %v2303
  %v2305 = vlaneseq
  %v2306 = vshrl.u32 %v2305, 7
  %v2307 = vsub.s32 %v2304, %v2306
  %v2308 = vrot.slane %v2298, %v2307
  %v2309 = vcombine.high %v2308, %v2308
  %2310 = vrot.lane.b32.xlu0 %v2309, 40
  %v2311 = vpop.permute.xlu0 %2310
  %vm2313 = vcmask 648512
  %2314 = vst.msk [vmem:[#allocation2] sm:$0x3] %vm2313, %v2311
  %v2315 = vcombine.high %v2298, %v2298
  %v2317 = vunpack.c.l.s4 1983009808
  %v2318 = vunpack.c.0.s8 %v2317
  %v2319 = vlaneseq
  %v2320 = vshrl.u32 %v2319, 7
  %v2321 = vsub.s32 %v2318, %v2320
  %v2322 = vrot.slane %v2315, %v2321
  %2323 = vrot.lane.b32.xlu0 %v2322, 80
  %v2324 = vpop.permute.xlu0 %2323
  %vm2326 = vcmask 976512
  %2327 = vst.msk [vmem:[#allocation2] sm:$0x3] %vm2326, %v2324
  %v2328 = vcombine.high %v2322, %v2322
  %2329 = vrot.lane.b32.xlu0 %v2328, 120
  %v2330 = vpop.permute.xlu0 %2329
  %v2331 = vrot.slane %v2330, 6
  %vm2332 = vcmask 982016
  %v2333 = vsel %vm2332, %v2331, %v2330
  %vm2335 = vcmask 1042368
  %vm2336 = vcmask 257026
  %vm2337 = vmor %vm2336, %vm2335
  %2338 = vst.msk [vmem:[#allocation2] sm:$0xf] %vm2337, %v2333
  %v2339 = vld [vmem:[#allocation2] sm:$0xf]
  %v2342 = vunpack.c.l.s4 1983009808
  %v2343 = vunpack.c.0.s8 %v2342
  %v2344 = vlaneseq
  %v2345 = vshrl.u32 %v2344, 7
  %v2346 = vsub.s32 %v2343, %v2345
  %v2347 = vrot.slane %v2339, %v2346
  %v2348 = vcombine.high %v2347, %v2347
  %v2351 = vpack.c.bf16 %v2347, %v2347
  %v2352 = vpack.c.bf16 %v2348, %v2348
  %v2353 = vld [vmem:[%s3] sm:$0xff]
  %v2354 = vld [vmem:[%s3 + $0x8] sm:$0xff]
  %v2355 = vld [vmem:[%s3 + $0x10] sm:$0xff]
  %v2356 = vld [vmem:[%s3 + $0x18] sm:$0xff]
  %v2357 = vld [vmem:[%s3 + $0x20] sm:$0xff]
  %v2358 = vld [vmem:[%s3 + $0x28] sm:$0xff]
  %v2359 = vld [vmem:[%s3 + $0x30] sm:$0xff]
  %v2360 = vld [vmem:[%s3 + $0x38] sm:$0xff]
  %v2361 = vld [vmem:[%s3 + $0x40] sm:$0xff]
  %v2362 = vld [vmem:[%s3 + $0x48] sm:$0xff]
  %v2363 = vld [vmem:[%s3 + $0x50] sm:$0xff]
  %v2364 = vld [vmem:[%s3 + $0x58] sm:$0xff]
  %v2365 = vld [vmem:[%s3 + $0x60] sm:$0xff]
  %v2366 = vld [vmem:[%s3 + $0x68] sm:$0xff]
  %v2367 = vld [vmem:[%s3 + $0x70] sm:$0xff]
  %v2368 = vld [vmem:[%s3 + $0x78] sm:$0xff]
  %v2369 = vld [vmem:[%s3 + $0x80] sm:$0xff]
  %v2370 = vld [vmem:[%s3 + $0x88] sm:$0xff]
  %v2371 = vld [vmem:[%s3 + $0x90] sm:$0xff]
  %v2372 = vld [vmem:[%s3 + $0x98] sm:$0xff]
  %v2373 = vld [vmem:[%s3 + $0xa0] sm:$0xff]
  %v2374 = vld [vmem:[%s3 + $0xa8] sm:$0xff]
  %v2375 = vld [vmem:[%s3 + $0xb0] sm:$0xff]
  %v2376 = vld [vmem:[%s3 + $0xb8] sm:$0xff]
  %v2377 = vld [vmem:[%s3 + $0xc0] sm:$0xff]
  %v2378 = vld [vmem:[%s3 + $0xc8] sm:$0xff]
  %v2379 = vld [vmem:[%s3 + $0xd0] sm:$0xff]
  %v2380 = vld [vmem:[%s3 + $0xd8] sm:$0xff]
  %v2381 = vld [vmem:[%s3 + $0xe0] sm:$0xff]
  %v2382 = vld [vmem:[%s3 + $0xe8] sm:$0xff]
  %v2383 = vld [vmem:[%s3 + $0xf0] sm:$0xff]
  %v2384 = vld [vmem:[%s3 + $0xf8] sm:$0xff]
  %v2385 = vld [vmem:[%s3 + $0x100] sm:$0xff]
  %v2386 = vld [vmem:[%s3 + $0x108] sm:$0xff]
  %v2387 = vld [vmem:[%s3 + $0x110] sm:$0xff]
  %v2388 = vld [vmem:[%s3 + $0x118] sm:$0xff]
  %v2389 = vld [vmem:[%s3 + $0x120] sm:$0xff]
  %v2390 = vld [vmem:[%s3 + $0x128] sm:$0xff]
  %v2391 = vld [vmem:[%s3 + $0x130] sm:$0xff]
  %v2392 = vld [vmem:[%s3 + $0x138] sm:$0xff]
  %v2393 = vld [vmem:[%s3 + $0x140] sm:$0xff]
  %v2394 = vld [vmem:[%s3 + $0x148] sm:$0xff]
  %v2395 = vld [vmem:[%s3 + $0x150] sm:$0xff]
  %v2396 = vld [vmem:[%s3 + $0x158] sm:$0xff]
  %v2397 = vld [vmem:[%s3 + $0x160] sm:$0xff]
  %v2398 = vld [vmem:[%s3 + $0x168] sm:$0xff]
  %v2399 = vld [vmem:[%s3 + $0x170] sm:$0xff]
  %v2400 = vld [vmem:[%s3 + $0x178] sm:$0xff]
  %v2401 = vld [vmem:[%s3 + $0x180] sm:$0xff]
  %v2402 = vld [vmem:[%s3 + $0x188] sm:$0xff]
  %v2403 = vld [vmem:[%s3 + $0x190] sm:$0xff]
  %v2404 = vld [vmem:[%s3 + $0x198] sm:$0xff]
  %v2405 = vld [vmem:[%s3 + $0x1a0] sm:$0xff]
  %v2406 = vld [vmem:[%s3 + $0x1a8] sm:$0xff]
  %v2407 = vld [vmem:[%s3 + $0x1b0] sm:$0xff]
  %v2408 = vld [vmem:[%s3 + $0x1b8] sm:$0xff]
  %v2409 = vld [vmem:[%s3 + $0x1c0] sm:$0xff]
  %v2410 = vld [vmem:[%s3 + $0x1c8] sm:$0xff]
  %v2411 = vld [vmem:[%s3 + $0x1d0] sm:$0xff]
  %v2412 = vld [vmem:[%s3 + $0x1d8] sm:$0xff]
  %v2413 = vld [vmem:[%s4] sm:$0x3f]
  %v2415 = vlaneseq
  %v2416 = vshrl.u32 %v2415, 7
  %v2417 = vsub.s32 0, %v2416
  %v2418 = vrot.slane %v2413, %v2417
  %v2419 = vlaneseq
  %v2420 = vshrl.u32 %v2419, 7
  %v2421 = vsub.s32 1, %v2420
  %v2422 = vrot.slane %v2413, %v2421
  %v2423 = vlaneseq
  %v2424 = vshrl.u32 %v2423, 7
  %v2425 = vsub.s32 2, %v2424
  %v2426 = vrot.slane %v2413, %v2425
  %v2427 = vlaneseq
  %v2428 = vshrl.u32 %v2427, 7
  %v2429 = vsub.s32 3, %v2428
  %v2430 = vrot.slane %v2413, %v2429
  %v2431 = vlaneseq
  %v2432 = vshrl.u32 %v2431, 7
  %v2433 = vsub.s32 4, %v2432
  %v2434 = vrot.slane %v2413, %v2433
  %v2435 = vlaneseq
  %v2436 = vshrl.u32 %v2435, 7
  %v2437 = vsub.s32 5, %v2436
  %v2438 = vrot.slane %v2413, %v2437
  %v2505 = vunpack.c.l.b16 %v2353
  %v2506 = vunpack.c.h.b16 %v2353
  %v2507 = vunpack.c.l.b16 %v2354
  %v2508 = vunpack.c.h.b16 %v2354
  %v2509 = vunpack.c.l.b16 %v2355
  %v2510 = vunpack.c.h.b16 %v2355
  %v2511 = vunpack.c.l.b16 %v2356
  %v2512 = vunpack.c.h.b16 %v2356
  %v2513 = vunpack.c.l.b16 %v2357
  %v2514 = vunpack.c.h.b16 %v2357
  %v2515 = vunpack.c.l.b16 %v2358
  %v2516 = vunpack.c.h.b16 %v2358
  %v2517 = vunpack.c.l.b16 %v2359
  %v2518 = vunpack.c.h.b16 %v2359
  %v2519 = vunpack.c.l.b16 %v2360
  %v2520 = vunpack.c.h.b16 %v2360
  %v2521 = vunpack.c.l.b16 %v2361
  %v2522 = vunpack.c.h.b16 %v2361
  %v2523 = vunpack.c.l.b16 %v2362
  %v2524 = vunpack.c.h.b16 %v2362
  %v2525 = vunpack.c.l.b16 %v2363
  %v2526 = vunpack.c.h.b16 %v2363
  %v2527 = vunpack.c.l.b16 %v2364
  %v2528 = vunpack.c.h.b16 %v2364
  %v2529 = vunpack.c.l.b16 %v2365
  %v2530 = vunpack.c.h.b16 %v2365
  %v2531 = vunpack.c.l.b16 %v2366
  %v2532 = vunpack.c.h.b16 %v2366
  %v2533 = vunpack.c.l.b16 %v2367
  %v2534 = vunpack.c.h.b16 %v2367
  %v2535 = vunpack.c.l.b16 %v2368
  %v2536 = vunpack.c.h.b16 %v2368
  %v2537 = vunpack.c.l.b16 %v2369
  %v2538 = vunpack.c.h.b16 %v2369
  %v2539 = vunpack.c.l.b16 %v2370
  %v2540 = vunpack.c.h.b16 %v2370
  %v2541 = vunpack.c.l.b16 %v2371
  %v2542 = vunpack.c.h.b16 %v2371
  %v2543 = vunpack.c.l.b16 %v2372
  %v2544 = vunpack.c.h.b16 %v2372
  %v2545 = vunpack.c.l.b16 %v2373
  %v2546 = vunpack.c.h.b16 %v2373
  %v2547 = vunpack.c.l.b16 %v2374
  %v2548 = vunpack.c.h.b16 %v2374
  %v2549 = vunpack.c.l.b16 %v2375
  %v2550 = vunpack.c.h.b16 %v2375
  %v2551 = vunpack.c.l.b16 %v2376
  %v2552 = vunpack.c.h.b16 %v2376
  %v2553 = vunpack.c.l.b16 %v2377
  %v2554 = vunpack.c.h.b16 %v2377
  %v2555 = vunpack.c.l.b16 %v2378
  %v2556 = vunpack.c.h.b16 %v2378
  %v2557 = vunpack.c.l.b16 %v2379
  %v2558 = vunpack.c.h.b16 %v2379
  %v2559 = vunpack.c.l.b16 %v2380
  %v2560 = vunpack.c.h.b16 %v2380
  %v2561 = vunpack.c.l.b16 %v2381
  %v2562 = vunpack.c.h.b16 %v2381
  %v2563 = vunpack.c.l.b16 %v2382
  %v2564 = vunpack.c.h.b16 %v2382
  %v2565 = vunpack.c.l.b16 %v2383
  %v2566 = vunpack.c.h.b16 %v2383
  %v2567 = vunpack.c.l.b16 %v2384
  %v2568 = vunpack.c.h.b16 %v2384
  %v2569 = vunpack.c.l.b16 %v2385
  %v2570 = vunpack.c.h.b16 %v2385
  %v2571 = vunpack.c.l.b16 %v2386
  %v2572 = vunpack.c.h.b16 %v2386
  %v2573 = vunpack.c.l.b16 %v2387
  %v2574 = vunpack.c.h.b16 %v2387
  %v2575 = vunpack.c.l.b16 %v2388
  %v2576 = vunpack.c.h.b16 %v2388
  %v2577 = vunpack.c.l.b16 %v2389
  %v2578 = vunpack.c.h.b16 %v2389
  %v2579 = vunpack.c.l.b16 %v2390
  %v2580 = vunpack.c.h.b16 %v2390
  %v2581 = vunpack.c.l.b16 %v2391
  %v2582 = vunpack.c.h.b16 %v2391
  %v2583 = vunpack.c.l.b16 %v2392
  %v2584 = vunpack.c.h.b16 %v2392
  %v2585 = vunpack.c.l.b16 %v2393
  %v2586 = vunpack.c.h.b16 %v2393
  %v2587 = vunpack.c.l.b16 %v2394
  %v2588 = vunpack.c.h.b16 %v2394
  %v2589 = vunpack.c.l.b16 %v2395
  %v2590 = vunpack.c.h.b16 %v2395
  %v2591 = vunpack.c.l.b16 %v2396
  %v2592 = vunpack.c.h.b16 %v2396
  %v2593 = vunpack.c.l.b16 %v2397
  %v2594 = vunpack.c.h.b16 %v2397
  %v2595 = vunpack.c.l.b16 %v2398
  %v2596 = vunpack.c.h.b16 %v2398
  %v2597 = vunpack.c.l.b16 %v2399
  %v2598 = vunpack.c.h.b16 %v2399
  %v2599 = vunpack.c.l.b16 %v2400
  %v2600 = vunpack.c.h.b16 %v2400
  %v2601 = vunpack.c.l.b16 %v2401
  %v2602 = vunpack.c.h.b16 %v2401
  %v2603 = vunpack.c.l.b16 %v2402
  %v2604 = vunpack.c.h.b16 %v2402
  %v2605 = vunpack.c.l.b16 %v2403
  %v2606 = vunpack.c.h.b16 %v2403
  %v2607 = vunpack.c.l.b16 %v2404
  %v2608 = vunpack.c.h.b16 %v2404
  %v2609 = vunpack.c.l.b16 %v2405
  %v2610 = vunpack.c.h.b16 %v2405
  %v2611 = vunpack.c.l.b16 %v2406
  %v2612 = vunpack.c.h.b16 %v2406
  %v2613 = vunpack.c.l.b16 %v2407
  %v2614 = vunpack.c.h.b16 %v2407
  %v2615 = vunpack.c.l.b16 %v2408
  %v2616 = vunpack.c.h.b16 %v2408
  %v2617 = vunpack.c.l.b16 %v2409
  %v2618 = vunpack.c.h.b16 %v2409
  %v2619 = vunpack.c.l.b16 %v2410
  %v2620 = vunpack.c.h.b16 %v2410
  %v2621 = vunpack.c.l.b16 %v2411
  %v2622 = vunpack.c.h.b16 %v2411
  %v2623 = vunpack.c.l.b16 %v2412
  %v2624 = vunpack.c.h.b16 %v2412
  %v2625 = vpack.c.b16 %v2511, %v2505
  %v2626 = vpack.c.b16 %v2512, %v2506
  %v2627 = vpack.c.b16 %v2513, %v2507
  %v2628 = vpack.c.b16 %v2514, %v2508
  %v2629 = vpack.c.b16 %v2515, %v2509
  %v2630 = vpack.c.b16 %v2516, %v2510
  %v2631 = vpack.c.b16 %v2523, %v2517
  %v2632 = vpack.c.b16 %v2524, %v2518
  %v2633 = vpack.c.b16 %v2525, %v2519
  %v2634 = vpack.c.b16 %v2526, %v2520
  %v2635 = vpack.c.b16 %v2527, %v2521
  %v2636 = vpack.c.b16 %v2528, %v2522
  %v2637 = vpack.c.b16 %v2535, %v2529
  %v2638 = vpack.c.b16 %v2536, %v2530
  %v2639 = vpack.c.b16 %v2537, %v2531
  %v2640 = vpack.c.b16 %v2538, %v2532
  %v2641 = vpack.c.b16 %v2539, %v2533
  %v2642 = vpack.c.b16 %v2540, %v2534
  %v2643 = vpack.c.b16 %v2547, %v2541
  %v2644 = vpack.c.b16 %v2548, %v2542
  %v2645 = vpack.c.b16 %v2549, %v2543
  %v2646 = vpack.c.b16 %v2550, %v2544
  %v2647 = vpack.c.b16 %v2551, %v2545
  %v2648 = vpack.c.b16 %v2552, %v2546
  %v2649 = vpack.c.b16 %v2559, %v2553
  %v2650 = vpack.c.b16 %v2560, %v2554
  %v2651 = vpack.c.b16 %v2561, %v2555
  %v2652 = vpack.c.b16 %v2562, %v2556
  %v2653 = vpack.c.b16 %v2563, %v2557
  %v2654 = vpack.c.b16 %v2564, %v2558
  %v2655 = vpack.c.b16 %v2571, %v2565
  %v2656 = vpack.c.b16 %v2572, %v2566
  %v2657 = vpack.c.b16 %v2573, %v2567
  %v2658 = vpack.c.b16 %v2574, %v2568
  %v2659 = vpack.c.b16 %v2575, %v2569
  %v2660 = vpack.c.b16 %v2576, %v2570
  %v2661 = vpack.c.b16 %v2583, %v2577
  %v2662 = vpack.c.b16 %v2584, %v2578
  %v2663 = vpack.c.b16 %v2585, %v2579
  %v2664 = vpack.c.b16 %v2586, %v2580
  %v2665 = vpack.c.b16 %v2587, %v2581
  %v2666 = vpack.c.b16 %v2588, %v2582
  %v2667 = vpack.c.b16 %v2595, %v2589
  %v2668 = vpack.c.b16 %v2596, %v2590
  %v2669 = vpack.c.b16 %v2597, %v2591
  %v2670 = vpack.c.b16 %v2598, %v2592
  %v2671 = vpack.c.b16 %v2599, %v2593
  %v2672 = vpack.c.b16 %v2600, %v2594
  %v2673 = vpack.c.b16 %v2607, %v2601
  %v2674 = vpack.c.b16 %v2608, %v2602
  %v2675 = vpack.c.b16 %v2609, %v2603
  %v2676 = vpack.c.b16 %v2610, %v2604
  %v2677 = vpack.c.b16 %v2611, %v2605
  %v2678 = vpack.c.b16 %v2612, %v2606
  %v2679 = vpack.c.b16 %v2619, %v2613
  %v2680 = vpack.c.b16 %v2620, %v2614
  %v2681 = vpack.c.b16 %v2621, %v2615
  %v2682 = vpack.c.b16 %v2622, %v2616
  %v2683 = vpack.c.b16 %v2623, %v2617
  %v2684 = vpack.c.b16 %v2624, %v2618
  %vm2745 = vcmask 261120
  %v2747 = vsel %vm2745, %v2352, 0
  %2749 = vmatprep.subr.bf16.mxu0 %v2668
  %2750 = vmatpush1.bf16.msra.mxu0 %v2667
  %2751 = vmatprep.subr.bf16.mxu0 %v2662
  %2752 = vmatpush1.bf16.msra.mxu0 %v2661
  %2753 = vmatprep.subr.bf16.mxu0 %v2656
  %2754 = vmatpush1.bf16.msra.mxu0 %v2655
  %2755 = vmatprep.subr.bf16.mxu0 %v2650
  %2756 = vmatpush1.bf16.msra.mxu0 %v2649
  %2757 = vmatprep.subr.bf16.mxu0 %v2644
  %2758 = vmatpush1.bf16.msra.mxu0 %v2643
  %2759 = vmatprep.subr.bf16.mxu0 %v2638
  %2760 = vmatpush1.bf16.msra.mxu0 %v2637
  %2761 = vmatprep.subr.bf16.mxu0 %v2632
  %2762 = vmatpush1.bf16.msra.mxu0 %v2631
  %2763 = vmatprep.subr.bf16.mxu0 %v2626
  %2764 = vmatpush1.bf16.msra.mxu0 %v2625
  %2765 = vmatprep.subr.bf16.mxu0 0
  %2766 = vmatpush2.bf16.msra.mxu0 0
  %2767 = vmatprep.subr.bf16.mxu0 0
  %2768 = vmatpush2.bf16.msra.mxu0 0
  %2769 = vmatprep.subr.bf16.mxu0 0
  %2770 = vmatpush2.bf16.msra.mxu0 0
  %2771 = vmatprep.subr.bf16.mxu0 0
  %2772 = vmatpush2.bf16.msra.mxu0 0
  %2773 = vmatprep.subr.bf16.mxu0 0
  %2774 = vmatpush2.bf16.msra.mxu0 0
  %2775 = vmatprep.subr.bf16.mxu0 0
  %2776 = vmatpush2.bf16.msra.mxu0 0
  %2777 = vmatprep.subr.bf16.mxu0 %v2680
  %2778 = vmatpush2.bf16.msra.mxu0 %v2679
  %2779 = vmatprep.subr.bf16.mxu0 %v2674
  %2780 = vmatpush2.bf16.msra.mxu0 %v2673
  %2781 = vmatprep.mubr.bf16.mxu0 %v2747
  %2782 = vmatmul.mubr.bf16.gmra.mxu0 %v2351
  %v2783 = vpop.f32.mrf.mxu0
  %v2784 = vadd.f32 %v2418, %v2783
  %v2785 = vpop.f32.mrf.mxu0
  %v2786 = vadd.f32 %v2422, %v2785
  %v2787 = vpop.f32.mrf.mxu0
  %v2788 = vpop.f32.mrf.mxu0
  %2789 = vdwg.mxu0
  %2790 = vmatprep.subr.bf16.mxu0 %v2670
  %2791 = vmatpush1.bf16.msra.mxu0 %v2669
  %2792 = vmatprep.subr.bf16.mxu0 %v2664
  %2793 = vmatpush1.bf16.msra.mxu0 %v2663
  %2794 = vmatprep.subr.bf16.mxu0 %v2658
  %2795 = vmatpush1.bf16.msra.mxu0 %v2657
  %2796 = vmatprep.subr.bf16.mxu0 %v2652
  %2797 = vmatpush1.bf16.msra.mxu0 %v2651
  %2798 = vmatprep.subr.bf16.mxu0 %v2646
  %2799 = vmatpush1.bf16.msra.mxu0 %v2645
  %2800 = vmatprep.subr.bf16.mxu0 %v2640
  %2801 = vmatpush1.bf16.msra.mxu0 %v2639
  %2802 = vmatprep.subr.bf16.mxu0 %v2634
  %2803 = vmatpush1.bf16.msra.mxu0 %v2633
  %2804 = vmatprep.subr.bf16.mxu0 %v2628
  %2805 = vmatpush1.bf16.msra.mxu0 %v2627
  %2806 = vmatprep.subr.bf16.mxu0 0
  %2807 = vmatpush2.bf16.msra.mxu0 0
  %2808 = vmatprep.subr.bf16.mxu0 0
  %2809 = vmatpush2.bf16.msra.mxu0 0
  %2810 = vmatprep.subr.bf16.mxu0 0
  %2811 = vmatpush2.bf16.msra.mxu0 0
  %2812 = vmatprep.subr.bf16.mxu0 0
  %2813 = vmatpush2.bf16.msra.mxu0 0
  %2814 = vmatprep.subr.bf16.mxu0 0
  %2815 = vmatpush2.bf16.msra.mxu0 0
  %2816 = vmatprep.subr.bf16.mxu0 0
  %2817 = vmatpush2.bf16.msra.mxu0 0
  %2818 = vmatprep.subr.bf16.mxu0 %v2682
  %2819 = vmatpush2.bf16.msra.mxu0 %v2681
  %2820 = vmatprep.subr.bf16.mxu0 %v2676
  %2821 = vmatpush2.bf16.msra.mxu0 %v2675
  %2822 = vmatprep.mubr.bf16.mxu0 %v2747
  %2823 = vmatmul.mubr.bf16.gmra.mxu0 %v2351
  %v2824 = vpop.f32.mrf.mxu0
  %v2825 = vadd.f32 %v2426, %v2824
  %v2826 = vpop.f32.mrf.mxu0
  %v2827 = vadd.f32 %v2430, %v2826
  %v2828 = vpop.f32.mrf.mxu0
  %v2829 = vpop.f32.mrf.mxu0
  %2830 = vdwg.mxu0
  %2831 = vmatprep.subr.bf16.mxu0 %v2672
  %2832 = vmatpush1.bf16.msra.mxu0 %v2671
  %2833 = vmatprep.subr.bf16.mxu0 %v2666
  %2834 = vmatpush1.bf16.msra.mxu0 %v2665
  %2835 = vmatprep.subr.bf16.mxu0 %v2660
  %2836 = vmatpush1.bf16.msra.mxu0 %v2659
  %2837 = vmatprep.subr.bf16.mxu0 %v2654
  %2838 = vmatpush1.bf16.msra.mxu0 %v2653
  %2839 = vmatprep.subr.bf16.mxu0 %v2648
  %2840 = vmatpush1.bf16.msra.mxu0 %v2647
  %2841 = vmatprep.subr.bf16.mxu0 %v2642
  %2842 = vmatpush1.bf16.msra.mxu0 %v2641
  %2843 = vmatprep.subr.bf16.mxu0 %v2636
  %2844 = vmatpush1.bf16.msra.mxu0 %v2635
  %2845 = vmatprep.subr.bf16.mxu0 %v2630
  %2846 = vmatpush1.bf16.msra.mxu0 %v2629
  %2847 = vmatprep.subr.bf16.mxu0 0
  %2848 = vmatpush2.bf16.msra.mxu0 0
  %2849 = vmatprep.subr.bf16.mxu0 0
  %2850 = vmatpush2.bf16.msra.mxu0 0
  %2851 = vmatprep.subr.bf16.mxu0 0
  %2852 = vmatpush2.bf16.msra.mxu0 0
  %2853 = vmatprep.subr.bf16.mxu0 0
  %2854 = vmatpush2.bf16.msra.mxu0 0
  %2855 = vmatprep.subr.bf16.mxu0 0
  %2856 = vmatpush2.bf16.msra.mxu0 0
  %2857 = vmatprep.subr.bf16.mxu0 0
  %2858 = vmatpush2.bf16.msra.mxu0 0
  %2859 = vmatprep.subr.bf16.mxu0 %v2684
  %2860 = vmatpush2.bf16.msra.mxu0 %v2683
  %2861 = vmatprep.subr.bf16.mxu0 %v2678
  %2862 = vmatpush2.bf16.msra.mxu0 %v2677
  %2863 = vmatprep.mubr.bf16.mxu0 %v2747
  %2864 = vmatmul.mubr.bf16.gmra.mxu0 %v2351
  %v2865 = vpop.f32.mrf.mxu0
  %v2866 = vadd.f32 %v2434, %v2865
  %v2867 = vpop.f32.mrf.mxu0
  %v2868 = vadd.f32 %v2438, %v2867
  %v2869 = vpop.f32.mrf.mxu0
  %v2870 = vpop.f32.mrf.mxu0
  %2871 = vdwg.mxu0
  %v2878 = vcombine.low %v2784, %v2786
  %v2879 = vcombine.low %v2825, %v2827
  %v2881 = vunpack.c.l.s4 1983009808
  %v2882 = vunpack.c.0.s8 %v2881
  %v2883 = vlaneseq
  %v2884 = vshrl.u32 %v2883, 7
  %v2885 = vsub.s32 %v2882, %v2884
  %v2886 = vrot.slane %v2878, %v2885
  %v2888 = vunpack.c.l.s4 1983009808
  %v2889 = vunpack.c.0.s8 %v2888
  %v2890 = vlaneseq
  %v2891 = vshrl.u32 %v2890, 7
  %v2892 = vsub.s32 %v2889, %v2891
  %v2893 = vrot.slane %v2879, %v2892
  %v2894 = vcombine.low %v2886, %v2893
  %v2895 = vcombine.low %v2866, %v2868
  %v2897 = vunpack.c.l.s4 1983009808
  %v2898 = vunpack.c.0.s8 %v2897
  %v2899 = vlaneseq
  %v2900 = vshrl.u32 %v2899, 7
  %v2901 = vsub.s32 %v2898, %v2900
  %v2902 = vrot.slane %v2895, %v2901
  %2905 = vst [vmem:[%s5] sm:$0xff] %v2894
  %vm2906 = vcmask 281602
  %vm2907 = vmor %vm2906, %vm1772
  %2908 = vst.msk [vmem:[%s5 + $0x8] sm:$0xf] %vm2907, %v2902
  // Predicated region
  $region22: #{model_tanh_forward.1} parent=0 // pred_check
    _
  $region23: #{model_tanh_forward.1} parent=0 // pred_check_branch
    %2910 = sbr.rel (0) target = $region25
  $region24: #{model_tanh_forward.1} parent=0 // pred_region
    _
  $region25: #{model_tanh_forward.1} parent=0 // pred_fallthru
    _
  // Predicated region
  $region26: #{model_tanh_forward.1} parent=0 // pred_check
    _
  $region27: #{model_tanh_forward.1} parent=0 // pred_check_branch
    %2912 = sbr.rel (0) target = $region29
  $region28: #{model_tanh_forward.1} parent=0 // pred_region
    _
  $region29: #{model_tanh_forward.1} parent=0 // pred_fallthru
    _

</llo_original>
